<compile_context>
chip_gen: v5e
topology: v5e:2x2
jax: 0.10.0
libtpu: 0.0.40
codegen_flags: <defaults>
</compile_context>

<pallas_src>
import functools

import jax
import jax.numpy as jnp
import numpy as np
from jax.experimental import pallas as pl
from jax.experimental.pallas import tpu as pltpu


def _round_up(x, m):
    return ((x + m - 1) // m) * m


def _pick_te_block(te_p, te_blk_max):
    """Largest multiple of 128 that divides te_p and is <= te_blk_max."""
    k = te_p // 128
    dmax = max(1, min(k, max(1, te_blk_max // 128)))
    for d in range(dmax, 0, -1):
        if k % d == 0:
            return 128 * d
    return 128


def _pad_last2(x, d1, d2, dtype):
    """Zero-pad the last two dims to (d1, d2); skip the copy if already sized."""
    s1, s2 = x.shape[-2], x.shape[-1]
    if s1 == d1 and s2 == d2:
        return x.astype(dtype)
    out = jnp.zeros(x.shape[:-2] + (d1, d2), dtype)
    return out.at[..., :s1, :s2].set(x.astype(dtype))


def _default_vmem_limit_bytes():
    # ~75% of physical VMEM, capped at 100 MiB (v6e/v5e have 128 MiB, v7x 64 MiB
    # -> 48 MiB there).  Fallback is safe on every generation.
    try:
        cap = int(pltpu.get_tpu_info().vmem_capacity_bytes)
        return min((cap * 3) // 4, 100 * 1024 * 1024)
    except Exception:
        return 48 * 1024 * 1024


def attention_kernel(v_sm, pd_ref, peT_ref, bias_ref, enc_ref,
                     ctx_ref, attn_ref, logits_ref,
                     *, te_blk, n_te, attn_dim, compute_dtype, unroll_chunks):
    tq = pd_ref.shape[0]

    def compute_chunk(off):
        # Accumulate sum_a v[a] * tanh(pd[:,a] + pe[a, off:off+te_blk]) in f32.
        acc = jnp.zeros((tq, te_blk), jnp.float32)
        for a in range(attn_dim):                                   # exact A, no lane padding
            pd_col = pd_ref[:, pl.ds(a, 1)].astype(compute_dtype)   # (tq, 1)   -> lane bcast
            pe_row = peT_ref[pl.ds(a, 1),
                             pl.ds(off, te_blk)].astype(compute_dtype)  # (1, te_blk) -> sublane bcast
            e = jnp.tanh(pd_col + pe_row)                           # (tq, te_blk) in compute_dtype
            acc = acc + v_sm[a] * e.astype(jnp.float32)             # f32 accumulation
        logits_ref[:, pl.ds(off, te_blk)] = acc

    if unroll_chunks:
        for c in range(n_te):                                       # static (LLO can interleave)
            compute_chunk(c * te_blk)
    else:
        def body(c, carry):
            compute_chunk(pl.multiple_of(c * te_blk, te_blk))
            return carry
        jax.lax.fori_loop(0, n_te, body, 0)

    # Single masked softmax over the encoder axis.  The additive bias (built in
    # the wrapper) is 0 on valid positions and -1e30 on pads / Te padding, so
    # this equals the module's softmax -> mask -> renormalize for 0/1 masks.
    logits = logits_ref[...] + bias_ref[...]                        # (tq, Te_p) f32
    m = jnp.max(logits, axis=-1, keepdims=True)
    p = jnp.exp(logits - m)
    s = jnp.sum(p, axis=-1, keepdims=True)
    inv = pl.reciprocal(s, approx=True)         # EUP seed
    inv = inv * (2.0 - s * inv)                 # Newton step 1
    inv = inv * (2.0 - s * inv)                 # Newton step 2 (~f32 accuracy)
    attn = p * inv                                                  # (tq, Te_p)
    attn_ref[...] = attn.astype(attn_ref.dtype)

    # Context: (tq, Te_p) @ (Te_p, Eh_p) on the MXU, operands in storage dtype
    # (bf16 when storage_dtype=bf16), f32 accumulation.
    ctx_ref[...] = jnp.dot(attn.astype(enc_ref.dtype), enc_ref[...],
                           preferred_element_type=jnp.float32).astype(ctx_ref.dtype)


def attention_pallas(encoded_seq, decoder_state, input_pad_mask,
                     wh, ws, ws_bias, sel_v, *,
                     storage_dtype=jnp.float32,
                     elementwise_dtype=jnp.float32,
                     out_dtype=jnp.float32,
                     tq_max=128, te_blk_max=256,
                     vmem_limit_bytes=None):
    """Fused additive-attention forward pass as a Pallas TPU kernel.

    Linear weights are stored as (in_features, out_features), i.e. x @ W.
    Returns (context_vector [B,Td,Eh], attn_weights_renormalized [B,Td,Te]).

    Perf configs:  v6e/v7x -> storage_dtype=elementwise_dtype=bf16
                   v5e     -> storage_dtype=bf16, elementwise_dtype=f32
                   (out_dtype=bf16 if downstream tolerates it)
    """
    B, Te, Eh = encoded_seq.shape
    _, Td, Dh = decoder_state.shape
    A = wh.shape[1]
    f32 = jnp.float32
    hi = jax.lax.Precision.HIGHEST

    # Lane/sublane-aligned padded sizes (Te only to 128, A never padded).
    Eh_p = _round_up(Eh, 128)
    Te_p = _round_up(Te, 128)
    te_blk = _pick_te_block(Te_p, te_blk_max)
    n_te = Te_p // te_blk
    tq = _round_up(min(max(tq_max, 8), _round_up(Td, 8)), 8)
    Td_p = _round_up(Td, tq)
    n_td = Td_p // tq

    enc_f32 = encoded_seq.astype(f32)
    dec_f32 = decoder_state.astype(f32)

    # Hoisted projections: computed ONCE per sequence (not per Td tile).
    # proj_enc is stored transposed (A on sublanes, Te lane-dense).
    proj_enc_T = jnp.einsum('bse,ea->bas', enc_f32, wh.astype(f32), precision=hi)
    proj_dec = jnp.einsum('btd,da->bta', dec_f32, ws.astype(f32), precision=hi)
    proj_dec = proj_dec + ws_bias.astype(f32)

    # Zero padding preserves the math: padded Eh columns contribute 0 to ctx,
    # padded Te columns are killed by the additive mask bias, padded Td rows
    # are sliced off at the end.  Copies are skipped when already aligned.
    enc_p = _pad_last2(enc_f32, Te_p, Eh_p, storage_dtype)
    peT_p = _pad_last2(proj_enc_T, A, Te_p, storage_dtype)
    pd_p = _pad_last2(proj_dec, Td_p, A, storage_dtype)

    # Additive mask bias: 0 on valid positions, -1e30 on pads and Te padding.
    mask_p = _pad_last2(input_pad_mask.astype(f32)[:, None, :], 1, Te_p, f32)
    bias_p = (mask_p - 1.0) * jnp.float32(1e30)

    v_p = sel_v.astype(f32)                    # (A,), scalar-prefetched to SMEM

    unroll_chunks = n_te <= 4
    kernel = functools.partial(attention_kernel, te_blk=te_blk, n_te=n_te,
                               attn_dim=A, compute_dtype=elementwise_dtype,
                               unroll_chunks=unroll_chunks)

    if vmem_limit_bytes is None:
        vmem_limit_bytes = _default_vmem_limit_bytes()

    grid_spec = pltpu.PrefetchScalarGridSpec(
        num_scalar_prefetch=1,                 # selector vector v -> SMEM
        grid=(B, n_td),
        in_specs=[
            pl.BlockSpec((None, tq, A), lambda b, t, v: (b, t, 0)),       # proj_dec
            pl.BlockSpec((None, A, Te_p), lambda b, t, v: (b, 0, 0)),     # proj_enc^T
            pl.BlockSpec((None, 1, Te_p), lambda b, t, v: (b, 0, 0)),     # mask bias
            pl.BlockSpec((None, Te_p, Eh_p), lambda b, t, v: (b, 0, 0)),  # enc (ctx matmul)
        ],
        out_specs=[
            pl.BlockSpec((None, tq, Eh_p), lambda b, t, v: (b, t, 0)),    # context
            pl.BlockSpec((None, tq, Te_p), lambda b, t, v: (b, t, 0)),    # attn weights
        ],
        scratch_shapes=[pltpu.VMEM((tq, Te_p), jnp.float32)],             # logits row
    )

    ctx_p, attn_p = pl.pallas_call(
        kernel,
        out_shape=(
            jax.ShapeDtypeStruct((B, Td_p, Eh_p), out_dtype),
            jax.ShapeDtypeStruct((B, Td_p, Te_p), out_dtype),
        ),
        grid_spec=grid_spec,
        compiler_params=pltpu.CompilerParams(
            dimension_semantics=("parallel", "parallel"),
            vmem_limit_bytes=vmem_limit_bytes,
        ),
    )(v_p, pd_p, peT_p, bias_p, enc_p)

    return ctx_p[:, :Td, :Eh], attn_p[:, :Td, :Te]


def attention_ref(encoded_seq, decoder_state, input_pad_mask, wh, ws, ws_bias, sel_v):
    """Pure-JAX reference mirroring the PyTorch forward."""
    hi = jax.lax.Precision.HIGHEST
    proj_dec = jnp.einsum('btd,da->bta', decoder_state, ws, precision=hi) + ws_bias
    proj_enc = jnp.einsum('bse,ea->bsa', encoded_seq, wh, precision=hi)
    added = jnp.tanh(proj_dec[:, :, None, :] + proj_enc[:, None, :, :])
    logits = jnp.einsum('btsa,a->bts', added, sel_v)
    attn = jax.nn.softmax(logits, axis=-1)
    attn2 = attn * input_pad_mask[:, None, :]
    attn_renorm = attn2 / jnp.sum(attn2, axis=-1, keepdims=True)
    ctx = jnp.einsum('bts,bse->bte', attn_renorm, encoded_seq, precision=hi)
    return ctx, attn_renorm


if __name__ == "__main__":
    def make_inputs(key, B, Te, Td, Eh, Dh, A, n_pad):
        ks = jax.random.split(key, 6)
        enc = jax.random.normal(ks[0], (B, Te, Eh), jnp.float32)
        dec = jax.random.normal(ks[1], (B, Td, Dh), jnp.float32)
        mask = jnp.concatenate(
            [jnp.ones((B, Te - n_pad), jnp.float32),
             jnp.zeros((B, n_pad), jnp.float32)], axis=-1)
        wh = jax.random.normal(ks[2], (Eh, A), jnp.float32) * 0.1
        ws = jax.random.normal(ks[3], (Dh, A), jnp.float32) * 0.1
        bs = jax.random.normal(ks[4], (A,), jnp.float32) * 0.1
        v = jax.random.normal(ks[5], (A,), jnp.float32) * 0.1
        return enc, dec, mask, wh, ws, bs, v

    key = jax.random.PRNGKey(0)
    k1, k2 = jax.random.split(key)

    # Case 1: module-like small shapes; exact (f32) path, tight check.
    args1 = make_inputs(k1, B=2, Te=16, Td=8, Eh=32, Dh=32, A=32, n_pad=3)
    ctx, attn = attention_pallas(*args1)
    jax.block_until_ready((ctx, attn))
    ctx_r, attn_r = attention_ref(*args1)
    np.testing.assert_allclose(np.asarray(ctx), np.asarray(ctx_r), rtol=1e-4, atol=2e-5)
    np.testing.assert_allclose(np.asarray(attn), np.asarray(attn_r), rtol=1e-4, atol=2e-5)

    # Case 1b: recommended v6e/v7x perf config (bf16 storage + bf16 elementwise);
    # looser tolerance because the tanh/add energies run in bf16.
    ctx_b, attn_b = attention_pallas(*args1, storage_dtype=jnp.bfloat16,
                                     elementwise_dtype=jnp.bfloat16)
    jax.block_until_ready((ctx_b, attn_b))
    np.testing.assert_allclose(np.asarray(ctx_b), np.asarray(ctx_r), rtol=2e-2, atol=2e-2)
    np.testing.assert_allclose(np.asarray(attn_b), np.asarray(attn_r), rtol=2e-2, atol=2e-2)

    # Case 2: exercises the Te chunk fori path (n_te=5), Td tiling (n_td=3),
    # a non-8-aligned attention dim (A=24), Td padding and Eh padding.
    args2 = make_inputs(k2, B=1, Te=640, Td=40, Eh=64, Dh=48, A=24, n_pad=7)
    ctx2, attn2 = attention_pallas(*args2, tq_max=16, te_blk_max=128)
    jax.block_until_ready((ctx2, attn2))
    ctx2_r, attn2_r = attention_ref(*args2)
    np.testing.assert_allclose(np.asarray(ctx2), np.asarray(ctx2_r), rtol=1e-4, atol=2e-5)
    np.testing.assert_allclose(np.asarray(attn2), np.asarray(attn2_r), rtol=1e-4, atol=2e-5)

    print("KERNEL_OK")
</pallas_src>

<mosaic_0001>
module attributes {stable_mosaic.version = 11 : i64} {
  func.func @attention_kernel(%arg0: i32, %arg1: i32, %arg2: memref<32xf32, #tpu.memory_space<smem>>, %arg3: memref<1x8x32xf32, #tpu.memory_space<vmem>>, %arg4: memref<1x32x128xf32, #tpu.memory_space<vmem>>, %arg5: memref<1x1x128xf32, #tpu.memory_space<vmem>>, %arg6: memref<1x128x128xf32, #tpu.memory_space<vmem>>, %arg7: memref<1x8x128xf32, #tpu.memory_space<vmem>>, %arg8: memref<1x8x128xf32, #tpu.memory_space<vmem>>, %arg9: memref<8x128xf32, #tpu.memory_space<vmem>>) attributes {dimension_semantics = [#tpu.dimension_semantics<parallel>, #tpu.dimension_semantics<parallel>], iteration_bounds = array<i64: 2, 1>, scalar_prefetch = 1 : i64, scratch_operands = 1 : i64, tpu.core_type = #tpu.core_type<tc>, window_params = [{transform_indices = @transform_0, window_bounds = array<i64: 1, 8, 32>}, {transform_indices = @transform_1, window_bounds = array<i64: 1, 32, 128>}, {transform_indices = @transform_2, window_bounds = array<i64: 1, 1, 128>}, {transform_indices = @transform_3, window_bounds = array<i64: 1, 128, 128>}, {transform_indices = @transform_4, window_bounds = array<i64: 1, 8, 128>}, {transform_indices = @transform_5, window_bounds = array<i64: 1, 8, 128>}]} {
    %cst = arith.constant 0.000000e+00 : f32
    %0 = vector.broadcast %cst : f32 to vector<8x128xf32>
    %c0 = arith.constant 0 : index
    %c0_0 = arith.constant 0 : index
    %c0_1 = arith.constant 0 : index
    %1 = vector.load %arg3[%c0, %c0_0, %c0_1] : memref<1x8x32xf32, #tpu.memory_space<vmem>>, vector<1x8x1xf32>
    %2 = vector.shape_cast %1 : vector<1x8x1xf32> to vector<8x1xf32>
    %c0_2 = arith.constant 0 : index
    %c0_3 = arith.constant 0 : index
    %c0_4 = arith.constant 0 : index
    %3 = vector.load %arg4[%c0_2, %c0_3, %c0_4] : memref<1x32x128xf32, #tpu.memory_space<vmem>>, vector<1x1x128xf32>
    %4 = vector.shape_cast %3 : vector<1x1x128xf32> to vector<1x128xf32>
    %5 = vector.broadcast %2 : vector<8x1xf32> to vector<8x128xf32>
    %6 = vector.broadcast %4 : vector<1x128xf32> to vector<8x128xf32>
    %7 = arith.addf %5, %6 : vector<8x128xf32>
    %8 = math.tanh %7 : vector<8x128xf32>
    %c0_5 = arith.constant 0 : index
    %9 = memref.load %arg2[%c0_5] : memref<32xf32, #tpu.memory_space<smem>>
    %10 = vector.broadcast %9 : f32 to vector<8x128xf32>
    %11 = arith.mulf %10, %8 : vector<8x128xf32>
    %12 = arith.addf %0, %11 : vector<8x128xf32>
    %c0_6 = arith.constant 0 : index
    %c0_7 = arith.constant 0 : index
    %c1 = arith.constant 1 : index
    %13 = vector.load %arg3[%c0_6, %c0_7, %c1] : memref<1x8x32xf32, #tpu.memory_space<vmem>>, vector<1x8x1xf32>
    %14 = vector.shape_cast %13 : vector<1x8x1xf32> to vector<8x1xf32>
    %c0_8 = arith.constant 0 : index
    %c1_9 = arith.constant 1 : index
    %c0_10 = arith.constant 0 : index
    %15 = vector.load %arg4[%c0_8, %c1_9, %c0_10] : memref<1x32x128xf32, #tpu.memory_space<vmem>>, vector<1x1x128xf32>
    %16 = vector.shape_cast %15 : vector<1x1x128xf32> to vector<1x128xf32>
    %17 = vector.broadcast %14 : vector<8x1xf32> to vector<8x128xf32>
    %18 = vector.broadcast %16 : vector<1x128xf32> to vector<8x128xf32>
    %19 = arith.addf %17, %18 : vector<8x128xf32>
    %20 = math.tanh %19 : vector<8x128xf32>
    %c1_11 = arith.constant 1 : index
    %21 = memref.load %arg2[%c1_11] : memref<32xf32, #tpu.memory_space<smem>>
    %22 = vector.broadcast %21 : f32 to vector<8x128xf32>
    %23 = arith.mulf %22, %20 : vector<8x128xf32>
    %24 = arith.addf %12, %23 : vector<8x128xf32>
    %c0_12 = arith.constant 0 : index
    %c0_13 = arith.constant 0 : index
    %c2 = arith.constant 2 : index
    %25 = vector.load %arg3[%c0_12, %c0_13, %c2] : memref<1x8x32xf32, #tpu.memory_space<vmem>>, vector<1x8x1xf32>
    %26 = vector.shape_cast %25 : vector<1x8x1xf32> to vector<8x1xf32>
    %c0_14 = arith.constant 0 : index
    %c2_15 = arith.constant 2 : index
    %c0_16 = arith.constant 0 : index
    %27 = vector.load %arg4[%c0_14, %c2_15, %c0_16] : memref<1x32x128xf32, #tpu.memory_space<vmem>>, vector<1x1x128xf32>
    %28 = vector.shape_cast %27 : vector<1x1x128xf32> to vector<1x128xf32>
    %29 = vector.broadcast %26 : vector<8x1xf32> to vector<8x128xf32>
    %30 = vector.broadcast %28 : vector<1x128xf32> to vector<8x128xf32>
    %31 = arith.addf %29, %30 : vector<8x128xf32>
    %32 = math.tanh %31 : vector<8x128xf32>
    %c2_17 = arith.constant 2 : index
    %33 = memref.load %arg2[%c2_17] : memref<32xf32, #tpu.memory_space<smem>>
    %34 = vector.broadcast %33 : f32 to vector<8x128xf32>
    %35 = arith.mulf %34, %32 : vector<8x128xf32>
    %36 = arith.addf %24, %35 : vector<8x128xf32>
    %c0_18 = arith.constant 0 : index
    %c0_19 = arith.constant 0 : index
    %c3 = arith.constant 3 : index
    %37 = vector.load %arg3[%c0_18, %c0_19, %c3] : memref<1x8x32xf32, #tpu.memory_space<vmem>>, vector<1x8x1xf32>
    %38 = vector.shape_cast %37 : vector<1x8x1xf32> to vector<8x1xf32>
    %c0_20 = arith.constant 0 : index
    %c3_21 = arith.constant 3 : index
    %c0_22 = arith.constant 0 : index
    %39 = vector.load %arg4[%c0_20, %c3_21, %c0_22] : memref<1x32x128xf32, #tpu.memory_space<vmem>>, vector<1x1x128xf32>
    %40 = vector.shape_cast %39 : vector<1x1x128xf32> to vector<1x128xf32>
    %41 = vector.broadcast %38 : vector<8x1xf32> to vector<8x128xf32>
    %42 = vector.broadcast %40 : vector<1x128xf32> to vector<8x128xf32>
    %43 = arith.addf %41, %42 : vector<8x128xf32>
    %44 = math.tanh %43 : vector<8x128xf32>
    %c3_23 = arith.constant 3 : index
    %45 = memref.load %arg2[%c3_23] : memref<32xf32, #tpu.memory_space<smem>>
    %46 = vector.broadcast %45 : f32 to vector<8x128xf32>
    %47 = arith.mulf %46, %44 : vector<8x128xf32>
    %48 = arith.addf %36, %47 : vector<8x128xf32>
    %c0_24 = arith.constant 0 : index
    %c0_25 = arith.constant 0 : index
    %c4 = arith.constant 4 : index
    %49 = vector.load %arg3[%c0_24, %c0_25, %c4] : memref<1x8x32xf32, #tpu.memory_space<vmem>>, vector<1x8x1xf32>
    %50 = vector.shape_cast %49 : vector<1x8x1xf32> to vector<8x1xf32>
    %c0_26 = arith.constant 0 : index
    %c4_27 = arith.constant 4 : index
    %c0_28 = arith.constant 0 : index
    %51 = vector.load %arg4[%c0_26, %c4_27, %c0_28] : memref<1x32x128xf32, #tpu.memory_space<vmem>>, vector<1x1x128xf32>
    %52 = vector.shape_cast %51 : vector<1x1x128xf32> to vector<1x128xf32>
    %53 = vector.broadcast %50 : vector<8x1xf32> to vector<8x128xf32>
    %54 = vector.broadcast %52 : vector<1x128xf32> to vector<8x128xf32>
    %55 = arith.addf %53, %54 : vector<8x128xf32>
    %56 = math.tanh %55 : vector<8x128xf32>
    %c4_29 = arith.constant 4 : index
    %57 = memref.load %arg2[%c4_29] : memref<32xf32, #tpu.memory_space<smem>>
    %58 = vector.broadcast %57 : f32 to vector<8x128xf32>
    %59 = arith.mulf %58, %56 : vector<8x128xf32>
    %60 = arith.addf %48, %59 : vector<8x128xf32>
    %c0_30 = arith.constant 0 : index
    %c0_31 = arith.constant 0 : index
    %c5 = arith.constant 5 : index
    %61 = vector.load %arg3[%c0_30, %c0_31, %c5] : memref<1x8x32xf32, #tpu.memory_space<vmem>>, vector<1x8x1xf32>
    %62 = vector.shape_cast %61 : vector<1x8x1xf32> to vector<8x1xf32>
    %c0_32 = arith.constant 0 : index
    %c5_33 = arith.constant 5 : index
    %c0_34 = arith.constant 0 : index
    %63 = vector.load %arg4[%c0_32, %c5_33, %c0_34] : memref<1x32x128xf32, #tpu.memory_space<vmem>>, vector<1x1x128xf32>
    %64 = vector.shape_cast %63 : vector<1x1x128xf32> to vector<1x128xf32>
    %65 = vector.broadcast %62 : vector<8x1xf32> to vector<8x128xf32>
    %66 = vector.broadcast %64 : vector<1x128xf32> to vector<8x128xf32>
    %67 = arith.addf %65, %66 : vector<8x128xf32>
    %68 = math.tanh %67 : vector<8x128xf32>
    %c5_35 = arith.constant 5 : index
    %69 = memref.load %arg2[%c5_35] : memref<32xf32, #tpu.memory_space<smem>>
    %70 = vector.broadcast %69 : f32 to vector<8x128xf32>
    %71 = arith.mulf %70, %68 : vector<8x128xf32>
    %72 = arith.addf %60, %71 : vector<8x128xf32>
    %c0_36 = arith.constant 0 : index
    %c0_37 = arith.constant 0 : index
    %c6 = arith.constant 6 : index
    %73 = vector.load %arg3[%c0_36, %c0_37, %c6] : memref<1x8x32xf32, #tpu.memory_space<vmem>>, vector<1x8x1xf32>
    %74 = vector.shape_cast %73 : vector<1x8x1xf32> to vector<8x1xf32>
    %c0_38 = arith.constant 0 : index
    %c6_39 = arith.constant 6 : index
    %c0_40 = arith.constant 0 : index
    %75 = vector.load %arg4[%c0_38, %c6_39, %c0_40] : memref<1x32x128xf32, #tpu.memory_space<vmem>>, vector<1x1x128xf32>
    %76 = vector.shape_cast %75 : vector<1x1x128xf32> to vector<1x128xf32>
    %77 = vector.broadcast %74 : vector<8x1xf32> to vector<8x128xf32>
    %78 = vector.broadcast %76 : vector<1x128xf32> to vector<8x128xf32>
    %79 = arith.addf %77, %78 : vector<8x128xf32>
    %80 = math.tanh %79 : vector<8x128xf32>
    %c6_41 = arith.constant 6 : index
    %81 = memref.load %arg2[%c6_41] : memref<32xf32, #tpu.memory_space<smem>>
    %82 = vector.broadcast %81 : f32 to vector<8x128xf32>
    %83 = arith.mulf %82, %80 : vector<8x128xf32>
    %84 = arith.addf %72, %83 : vector<8x128xf32>
    %c0_42 = arith.constant 0 : index
    %c0_43 = arith.constant 0 : index
    %c7 = arith.constant 7 : index
    %85 = vector.load %arg3[%c0_42, %c0_43, %c7] : memref<1x8x32xf32, #tpu.memory_space<vmem>>, vector<1x8x1xf32>
    %86 = vector.shape_cast %85 : vector<1x8x1xf32> to vector<8x1xf32>
    %c0_44 = arith.constant 0 : index
    %c7_45 = arith.constant 7 : index
    %c0_46 = arith.constant 0 : index
    %87 = vector.load %arg4[%c0_44, %c7_45, %c0_46] : memref<1x32x128xf32, #tpu.memory_space<vmem>>, vector<1x1x128xf32>
    %88 = vector.shape_cast %87 : vector<1x1x128xf32> to vector<1x128xf32>
    %89 = vector.broadcast %86 : vector<8x1xf32> to vector<8x128xf32>
    %90 = vector.broadcast %88 : vector<1x128xf32> to vector<8x128xf32>
    %91 = arith.addf %89, %90 : vector<8x128xf32>
    %92 = math.tanh %91 : vector<8x128xf32>
    %c7_47 = arith.constant 7 : index
    %93 = memref.load %arg2[%c7_47] : memref<32xf32, #tpu.memory_space<smem>>
    %94 = vector.broadcast %93 : f32 to vector<8x128xf32>
    %95 = arith.mulf %94, %92 : vector<8x128xf32>
    %96 = arith.addf %84, %95 : vector<8x128xf32>
    %c0_48 = arith.constant 0 : index
    %c0_49 = arith.constant 0 : index
    %c8 = arith.constant 8 : index
    %97 = vector.load %arg3[%c0_48, %c0_49, %c8] : memref<1x8x32xf32, #tpu.memory_space<vmem>>, vector<1x8x1xf32>
    %98 = vector.shape_cast %97 : vector<1x8x1xf32> to vector<8x1xf32>
    %c0_50 = arith.constant 0 : index
    %c8_51 = arith.constant 8 : index
    %c0_52 = arith.constant 0 : index
    %99 = vector.load %arg4[%c0_50, %c8_51, %c0_52] : memref<1x32x128xf32, #tpu.memory_space<vmem>>, vector<1x1x128xf32>
    %100 = vector.shape_cast %99 : vector<1x1x128xf32> to vector<1x128xf32>
    %101 = vector.broadcast %98 : vector<8x1xf32> to vector<8x128xf32>
    %102 = vector.broadcast %100 : vector<1x128xf32> to vector<8x128xf32>
    %103 = arith.addf %101, %102 : vector<8x128xf32>
    %104 = math.tanh %103 : vector<8x128xf32>
    %c8_53 = arith.constant 8 : index
    %105 = memref.load %arg2[%c8_53] : memref<32xf32, #tpu.memory_space<smem>>
    %106 = vector.broadcast %105 : f32 to vector<8x128xf32>
    %107 = arith.mulf %106, %104 : vector<8x128xf32>
    %108 = arith.addf %96, %107 : vector<8x128xf32>
    %c0_54 = arith.constant 0 : index
    %c0_55 = arith.constant 0 : index
    %c9 = arith.constant 9 : index
    %109 = vector.load %arg3[%c0_54, %c0_55, %c9] : memref<1x8x32xf32, #tpu.memory_space<vmem>>, vector<1x8x1xf32>
    %110 = vector.shape_cast %109 : vector<1x8x1xf32> to vector<8x1xf32>
    %c0_56 = arith.constant 0 : index
    %c9_57 = arith.constant 9 : index
    %c0_58 = arith.constant 0 : index
    %111 = vector.load %arg4[%c0_56, %c9_57, %c0_58] : memref<1x32x128xf32, #tpu.memory_space<vmem>>, vector<1x1x128xf32>
    %112 = vector.shape_cast %111 : vector<1x1x128xf32> to vector<1x128xf32>
    %113 = vector.broadcast %110 : vector<8x1xf32> to vector<8x128xf32>
    %114 = vector.broadcast %112 : vector<1x128xf32> to vector<8x128xf32>
    %115 = arith.addf %113, %114 : vector<8x128xf32>
    %116 = math.tanh %115 : vector<8x128xf32>
    %c9_59 = arith.constant 9 : index
    %117 = memref.load %arg2[%c9_59] : memref<32xf32, #tpu.memory_space<smem>>
    %118 = vector.broadcast %117 : f32 to vector<8x128xf32>
    %119 = arith.mulf %118, %116 : vector<8x128xf32>
    %120 = arith.addf %108, %119 : vector<8x128xf32>
    %c0_60 = arith.constant 0 : index
    %c0_61 = arith.constant 0 : index
    %c10 = arith.constant 10 : index
    %121 = vector.load %arg3[%c0_60, %c0_61, %c10] : memref<1x8x32xf32, #tpu.memory_space<vmem>>, vector<1x8x1xf32>
    %122 = vector.shape_cast %121 : vector<1x8x1xf32> to vector<8x1xf32>
    %c0_62 = arith.constant 0 : index
    %c10_63 = arith.constant 10 : index
    %c0_64 = arith.constant 0 : index
    %123 = vector.load %arg4[%c0_62, %c10_63, %c0_64] : memref<1x32x128xf32, #tpu.memory_space<vmem>>, vector<1x1x128xf32>
    %124 = vector.shape_cast %123 : vector<1x1x128xf32> to vector<1x128xf32>
    %125 = vector.broadcast %122 : vector<8x1xf32> to vector<8x128xf32>
    %126 = vector.broadcast %124 : vector<1x128xf32> to vector<8x128xf32>
    %127 = arith.addf %125, %126 : vector<8x128xf32>
    %128 = math.tanh %127 : vector<8x128xf32>
    %c10_65 = arith.constant 10 : index
    %129 = memref.load %arg2[%c10_65] : memref<32xf32, #tpu.memory_space<smem>>
    %130 = vector.broadcast %129 : f32 to vector<8x128xf32>
    %131 = arith.mulf %130, %128 : vector<8x128xf32>
    %132 = arith.addf %120, %131 : vector<8x128xf32>
    %c0_66 = arith.constant 0 : index
    %c0_67 = arith.constant 0 : index
    %c11 = arith.constant 11 : index
    %133 = vector.load %arg3[%c0_66, %c0_67, %c11] : memref<1x8x32xf32, #tpu.memory_space<vmem>>, vector<1x8x1xf32>
    %134 = vector.shape_cast %133 : vector<1x8x1xf32> to vector<8x1xf32>
    %c0_68 = arith.constant 0 : index
    %c11_69 = arith.constant 11 : index
    %c0_70 = arith.constant 0 : index
    %135 = vector.load %arg4[%c0_68, %c11_69, %c0_70] : memref<1x32x128xf32, #tpu.memory_space<vmem>>, vector<1x1x128xf32>
    %136 = vector.shape_cast %135 : vector<1x1x128xf32> to vector<1x128xf32>
    %137 = vector.broadcast %134 : vector<8x1xf32> to vector<8x128xf32>
    %138 = vector.broadcast %136 : vector<1x128xf32> to vector<8x128xf32>
    %139 = arith.addf %137, %138 : vector<8x128xf32>
    %140 = math.tanh %139 : vector<8x128xf32>
    %c11_71 = arith.constant 11 : index
    %141 = memref.load %arg2[%c11_71] : memref<32xf32, #tpu.memory_space<smem>>
    %142 = vector.broadcast %141 : f32 to vector<8x128xf32>
    %143 = arith.mulf %142, %140 : vector<8x128xf32>
    %144 = arith.addf %132, %143 : vector<8x128xf32>
    %c0_72 = arith.constant 0 : index
    %c0_73 = arith.constant 0 : index
    %c12 = arith.constant 12 : index
    %145 = vector.load %arg3[%c0_72, %c0_73, %c12] : memref<1x8x32xf32, #tpu.memory_space<vmem>>, vector<1x8x1xf32>
    %146 = vector.shape_cast %145 : vector<1x8x1xf32> to vector<8x1xf32>
    %c0_74 = arith.constant 0 : index
    %c12_75 = arith.constant 12 : index
    %c0_76 = arith.constant 0 : index
    %147 = vector.load %arg4[%c0_74, %c12_75, %c0_76] : memref<1x32x128xf32, #tpu.memory_space<vmem>>, vector<1x1x128xf32>
    %148 = vector.shape_cast %147 : vector<1x1x128xf32> to vector<1x128xf32>
    %149 = vector.broadcast %146 : vector<8x1xf32> to vector<8x128xf32>
    %150 = vector.broadcast %148 : vector<1x128xf32> to vector<8x128xf32>
    %151 = arith.addf %149, %150 : vector<8x128xf32>
    %152 = math.tanh %151 : vector<8x128xf32>
    %c12_77 = arith.constant 12 : index
    %153 = memref.load %arg2[%c12_77] : memref<32xf32, #tpu.memory_space<smem>>
    %154 = vector.broadcast %153 : f32 to vector<8x128xf32>
    %155 = arith.mulf %154, %152 : vector<8x128xf32>
    %156 = arith.addf %144, %155 : vector<8x128xf32>
    %c0_78 = arith.constant 0 : index
    %c0_79 = arith.constant 0 : index
    %c13 = arith.constant 13 : index
    %157 = vector.load %arg3[%c0_78, %c0_79, %c13] : memref<1x8x32xf32, #tpu.memory_space<vmem>>, vector<1x8x1xf32>
    %158 = vector.shape_cast %157 : vector<1x8x1xf32> to vector<8x1xf32>
    %c0_80 = arith.constant 0 : index
    %c13_81 = arith.constant 13 : index
    %c0_82 = arith.constant 0 : index
    %159 = vector.load %arg4[%c0_80, %c13_81, %c0_82] : memref<1x32x128xf32, #tpu.memory_space<vmem>>, vector<1x1x128xf32>
    %160 = vector.shape_cast %159 : vector<1x1x128xf32> to vector<1x128xf32>
    %161 = vector.broadcast %158 : vector<8x1xf32> to vector<8x128xf32>
    %162 = vector.broadcast %160 : vector<1x128xf32> to vector<8x128xf32>
    %163 = arith.addf %161, %162 : vector<8x128xf32>
    %164 = math.tanh %163 : vector<8x128xf32>
    %c13_83 = arith.constant 13 : index
    %165 = memref.load %arg2[%c13_83] : memref<32xf32, #tpu.memory_space<smem>>
    %166 = vector.broadcast %165 : f32 to vector<8x128xf32>
    %167 = arith.mulf %166, %164 : vector<8x128xf32>
    %168 = arith.addf %156, %167 : vector<8x128xf32>
    %c0_84 = arith.constant 0 : index
    %c0_85 = arith.constant 0 : index
    %c14 = arith.constant 14 : index
    %169 = vector.load %arg3[%c0_84, %c0_85, %c14] : memref<1x8x32xf32, #tpu.memory_space<vmem>>, vector<1x8x1xf32>
    %170 = vector.shape_cast %169 : vector<1x8x1xf32> to vector<8x1xf32>
    %c0_86 = arith.constant 0 : index
    %c14_87 = arith.constant 14 : index
    %c0_88 = arith.constant 0 : index
    %171 = vector.load %arg4[%c0_86, %c14_87, %c0_88] : memref<1x32x128xf32, #tpu.memory_space<vmem>>, vector<1x1x128xf32>
    %172 = vector.shape_cast %171 : vector<1x1x128xf32> to vector<1x128xf32>
    %173 = vector.broadcast %170 : vector<8x1xf32> to vector<8x128xf32>
    %174 = vector.broadcast %172 : vector<1x128xf32> to vector<8x128xf32>
    %175 = arith.addf %173, %174 : vector<8x128xf32>
    %176 = math.tanh %175 : vector<8x128xf32>
    %c14_89 = arith.constant 14 : index
    %177 = memref.load %arg2[%c14_89] : memref<32xf32, #tpu.memory_space<smem>>
    %178 = vector.broadcast %177 : f32 to vector<8x128xf32>
    %179 = arith.mulf %178, %176 : vector<8x128xf32>
    %180 = arith.addf %168, %179 : vector<8x128xf32>
    %c0_90 = arith.constant 0 : index
    %c0_91 = arith.constant 0 : index
    %c15 = arith.constant 15 : index
    %181 = vector.load %arg3[%c0_90, %c0_91, %c15] : memref<1x8x32xf32, #tpu.memory_space<vmem>>, vector<1x8x1xf32>
    %182 = vector.shape_cast %181 : vector<1x8x1xf32> to vector<8x1xf32>
    %c0_92 = arith.constant 0 : index
    %c15_93 = arith.constant 15 : index
    %c0_94 = arith.constant 0 : index
    %183 = vector.load %arg4[%c0_92, %c15_93, %c0_94] : memref<1x32x128xf32, #tpu.memory_space<vmem>>, vector<1x1x128xf32>
    %184 = vector.shape_cast %183 : vector<1x1x128xf32> to vector<1x128xf32>
    %185 = vector.broadcast %182 : vector<8x1xf32> to vector<8x128xf32>
    %186 = vector.broadcast %184 : vector<1x128xf32> to vector<8x128xf32>
    %187 = arith.addf %185, %186 : vector<8x128xf32>
    %188 = math.tanh %187 : vector<8x128xf32>
    %c15_95 = arith.constant 15 : index
    %189 = memref.load %arg2[%c15_95] : memref<32xf32, #tpu.memory_space<smem>>
    %190 = vector.broadcast %189 : f32 to vector<8x128xf32>
    %191 = arith.mulf %190, %188 : vector<8x128xf32>
    %192 = arith.addf %180, %191 : vector<8x128xf32>
    %c0_96 = arith.constant 0 : index
    %c0_97 = arith.constant 0 : index
    %c16 = arith.constant 16 : index
    %193 = vector.load %arg3[%c0_96, %c0_97, %c16] : memref<1x8x32xf32, #tpu.memory_space<vmem>>, vector<1x8x1xf32>
    %194 = vector.shape_cast %193 : vector<1x8x1xf32> to vector<8x1xf32>
    %c0_98 = arith.constant 0 : index
    %c16_99 = arith.constant 16 : index
    %c0_100 = arith.constant 0 : index
    %195 = vector.load %arg4[%c0_98, %c16_99, %c0_100] : memref<1x32x128xf32, #tpu.memory_space<vmem>>, vector<1x1x128xf32>
    %196 = vector.shape_cast %195 : vector<1x1x128xf32> to vector<1x128xf32>
    %197 = vector.broadcast %194 : vector<8x1xf32> to vector<8x128xf32>
    %198 = vector.broadcast %196 : vector<1x128xf32> to vector<8x128xf32>
    %199 = arith.addf %197, %198 : vector<8x128xf32>
    %200 = math.tanh %199 : vector<8x128xf32>
    %c16_101 = arith.constant 16 : index
    %201 = memref.load %arg2[%c16_101] : memref<32xf32, #tpu.memory_space<smem>>
    %202 = vector.broadcast %201 : f32 to vector<8x128xf32>
    %203 = arith.mulf %202, %200 : vector<8x128xf32>
    %204 = arith.addf %192, %203 : vector<8x128xf32>
    %c0_102 = arith.constant 0 : index
    %c0_103 = arith.constant 0 : index
    %c17 = arith.constant 17 : index
    %205 = vector.load %arg3[%c0_102, %c0_103, %c17] : memref<1x8x32xf32, #tpu.memory_space<vmem>>, vector<1x8x1xf32>
    %206 = vector.shape_cast %205 : vector<1x8x1xf32> to vector<8x1xf32>
    %c0_104 = arith.constant 0 : index
    %c17_105 = arith.constant 17 : index
    %c0_106 = arith.constant 0 : index
    %207 = vector.load %arg4[%c0_104, %c17_105, %c0_106] : memref<1x32x128xf32, #tpu.memory_space<vmem>>, vector<1x1x128xf32>
    %208 = vector.shape_cast %207 : vector<1x1x128xf32> to vector<1x128xf32>
    %209 = vector.broadcast %206 : vector<8x1xf32> to vector<8x128xf32>
    %210 = vector.broadcast %208 : vector<1x128xf32> to vector<8x128xf32>
    %211 = arith.addf %209, %210 : vector<8x128xf32>
    %212 = math.tanh %211 : vector<8x128xf32>
    %c17_107 = arith.constant 17 : index
    %213 = memref.load %arg2[%c17_107] : memref<32xf32, #tpu.memory_space<smem>>
    %214 = vector.broadcast %213 : f32 to vector<8x128xf32>
    %215 = arith.mulf %214, %212 : vector<8x128xf32>
    %216 = arith.addf %204, %215 : vector<8x128xf32>
    %c0_108 = arith.constant 0 : index
    %c0_109 = arith.constant 0 : index
    %c18 = arith.constant 18 : index
    %217 = vector.load %arg3[%c0_108, %c0_109, %c18] : memref<1x8x32xf32, #tpu.memory_space<vmem>>, vector<1x8x1xf32>
    %218 = vector.shape_cast %217 : vector<1x8x1xf32> to vector<8x1xf32>
    %c0_110 = arith.constant 0 : index
    %c18_111 = arith.constant 18 : index
    %c0_112 = arith.constant 0 : index
    %219 = vector.load %arg4[%c0_110, %c18_111, %c0_112] : memref<1x32x128xf32, #tpu.memory_space<vmem>>, vector<1x1x128xf32>
    %220 = vector.shape_cast %219 : vector<1x1x128xf32> to vector<1x128xf32>
    %221 = vector.broadcast %218 : vector<8x1xf32> to vector<8x128xf32>
    %222 = vector.broadcast %220 : vector<1x128xf32> to vector<8x128xf32>
    %223 = arith.addf %221, %222 : vector<8x128xf32>
    %224 = math.tanh %223 : vector<8x128xf32>
    %c18_113 = arith.constant 18 : index
    %225 = memref.load %arg2[%c18_113] : memref<32xf32, #tpu.memory_space<smem>>
    %226 = vector.broadcast %225 : f32 to vector<8x128xf32>
    %227 = arith.mulf %226, %224 : vector<8x128xf32>
    %228 = arith.addf %216, %227 : vector<8x128xf32>
    %c0_114 = arith.constant 0 : index
    %c0_115 = arith.constant 0 : index
    %c19 = arith.constant 19 : index
    %229 = vector.load %arg3[%c0_114, %c0_115, %c19] : memref<1x8x32xf32, #tpu.memory_space<vmem>>, vector<1x8x1xf32>
    %230 = vector.shape_cast %229 : vector<1x8x1xf32> to vector<8x1xf32>
    %c0_116 = arith.constant 0 : index
    %c19_117 = arith.constant 19 : index
    %c0_118 = arith.constant 0 : index
    %231 = vector.load %arg4[%c0_116, %c19_117, %c0_118] : memref<1x32x128xf32, #tpu.memory_space<vmem>>, vector<1x1x128xf32>
    %232 = vector.shape_cast %231 : vector<1x1x128xf32> to vector<1x128xf32>
    %233 = vector.broadcast %230 : vector<8x1xf32> to vector<8x128xf32>
    %234 = vector.broadcast %232 : vector<1x128xf32> to vector<8x128xf32>
    %235 = arith.addf %233, %234 : vector<8x128xf32>
    %236 = math.tanh %235 : vector<8x128xf32>
    %c19_119 = arith.constant 19 : index
    %237 = memref.load %arg2[%c19_119] : memref<32xf32, #tpu.memory_space<smem>>
    %238 = vector.broadcast %237 : f32 to vector<8x128xf32>
    %239 = arith.mulf %238, %236 : vector<8x128xf32>
    %240 = arith.addf %228, %239 : vector<8x128xf32>
    %c0_120 = arith.constant 0 : index
    %c0_121 = arith.constant 0 : index
    %c20 = arith.constant 20 : index
    %241 = vector.load %arg3[%c0_120, %c0_121, %c20] : memref<1x8x32xf32, #tpu.memory_space<vmem>>, vector<1x8x1xf32>
    %242 = vector.shape_cast %241 : vector<1x8x1xf32> to vector<8x1xf32>
    %c0_122 = arith.constant 0 : index
    %c20_123 = arith.constant 20 : index
    %c0_124 = arith.constant 0 : index
    %243 = vector.load %arg4[%c0_122, %c20_123, %c0_124] : memref<1x32x128xf32, #tpu.memory_space<vmem>>, vector<1x1x128xf32>
    %244 = vector.shape_cast %243 : vector<1x1x128xf32> to vector<1x128xf32>
    %245 = vector.broadcast %242 : vector<8x1xf32> to vector<8x128xf32>
    %246 = vector.broadcast %244 : vector<1x128xf32> to vector<8x128xf32>
    %247 = arith.addf %245, %246 : vector<8x128xf32>
    %248 = math.tanh %247 : vector<8x128xf32>
    %c20_125 = arith.constant 20 : index
    %249 = memref.load %arg2[%c20_125] : memref<32xf32, #tpu.memory_space<smem>>
    %250 = vector.broadcast %249 : f32 to vector<8x128xf32>
    %251 = arith.mulf %250, %248 : vector<8x128xf32>
    %252 = arith.addf %240, %251 : vector<8x128xf32>
    %c0_126 = arith.constant 0 : index
    %c0_127 = arith.constant 0 : index
    %c21 = arith.constant 21 : index
    %253 = vector.load %arg3[%c0_126, %c0_127, %c21] : memref<1x8x32xf32, #tpu.memory_space<vmem>>, vector<1x8x1xf32>
    %254 = vector.shape_cast %253 : vector<1x8x1xf32> to vector<8x1xf32>
    %c0_128 = arith.constant 0 : index
    %c21_129 = arith.constant 21 : index
    %c0_130 = arith.constant 0 : index
    %255 = vector.load %arg4[%c0_128, %c21_129, %c0_130] : memref<1x32x128xf32, #tpu.memory_space<vmem>>, vector<1x1x128xf32>
    %256 = vector.shape_cast %255 : vector<1x1x128xf32> to vector<1x128xf32>
    %257 = vector.broadcast %254 : vector<8x1xf32> to vector<8x128xf32>
    %258 = vector.broadcast %256 : vector<1x128xf32> to vector<8x128xf32>
    %259 = arith.addf %257, %258 : vector<8x128xf32>
    %260 = math.tanh %259 : vector<8x128xf32>
    %c21_131 = arith.constant 21 : index
    %261 = memref.load %arg2[%c21_131] : memref<32xf32, #tpu.memory_space<smem>>
    %262 = vector.broadcast %261 : f32 to vector<8x128xf32>
    %263 = arith.mulf %262, %260 : vector<8x128xf32>
    %264 = arith.addf %252, %263 : vector<8x128xf32>
    %c0_132 = arith.constant 0 : index
    %c0_133 = arith.constant 0 : index
    %c22 = arith.constant 22 : index
    %265 = vector.load %arg3[%c0_132, %c0_133, %c22] : memref<1x8x32xf32, #tpu.memory_space<vmem>>, vector<1x8x1xf32>
    %266 = vector.shape_cast %265 : vector<1x8x1xf32> to vector<8x1xf32>
    %c0_134 = arith.constant 0 : index
    %c22_135 = arith.constant 22 : index
    %c0_136 = arith.constant 0 : index
    %267 = vector.load %arg4[%c0_134, %c22_135, %c0_136] : memref<1x32x128xf32, #tpu.memory_space<vmem>>, vector<1x1x128xf32>
    %268 = vector.shape_cast %267 : vector<1x1x128xf32> to vector<1x128xf32>
    %269 = vector.broadcast %266 : vector<8x1xf32> to vector<8x128xf32>
    %270 = vector.broadcast %268 : vector<1x128xf32> to vector<8x128xf32>
    %271 = arith.addf %269, %270 : vector<8x128xf32>
    %272 = math.tanh %271 : vector<8x128xf32>
    %c22_137 = arith.constant 22 : index
    %273 = memref.load %arg2[%c22_137] : memref<32xf32, #tpu.memory_space<smem>>
    %274 = vector.broadcast %273 : f32 to vector<8x128xf32>
    %275 = arith.mulf %274, %272 : vector<8x128xf32>
    %276 = arith.addf %264, %275 : vector<8x128xf32>
    %c0_138 = arith.constant 0 : index
    %c0_139 = arith.constant 0 : index
    %c23 = arith.constant 23 : index
    %277 = vector.load %arg3[%c0_138, %c0_139, %c23] : memref<1x8x32xf32, #tpu.memory_space<vmem>>, vector<1x8x1xf32>
    %278 = vector.shape_cast %277 : vector<1x8x1xf32> to vector<8x1xf32>
    %c0_140 = arith.constant 0 : index
    %c23_141 = arith.constant 23 : index
    %c0_142 = arith.constant 0 : index
    %279 = vector.load %arg4[%c0_140, %c23_141, %c0_142] : memref<1x32x128xf32, #tpu.memory_space<vmem>>, vector<1x1x128xf32>
    %280 = vector.shape_cast %279 : vector<1x1x128xf32> to vector<1x128xf32>
    %281 = vector.broadcast %278 : vector<8x1xf32> to vector<8x128xf32>
    %282 = vector.broadcast %280 : vector<1x128xf32> to vector<8x128xf32>
    %283 = arith.addf %281, %282 : vector<8x128xf32>
    %284 = math.tanh %283 : vector<8x128xf32>
    %c23_143 = arith.constant 23 : index
    %285 = memref.load %arg2[%c23_143] : memref<32xf32, #tpu.memory_space<smem>>
    %286 = vector.broadcast %285 : f32 to vector<8x128xf32>
    %287 = arith.mulf %286, %284 : vector<8x128xf32>
    %288 = arith.addf %276, %287 : vector<8x128xf32>
    %c0_144 = arith.constant 0 : index
    %c0_145 = arith.constant 0 : index
    %c24 = arith.constant 24 : index
    %289 = vector.load %arg3[%c0_144, %c0_145, %c24] : memref<1x8x32xf32, #tpu.memory_space<vmem>>, vector<1x8x1xf32>
    %290 = vector.shape_cast %289 : vector<1x8x1xf32> to vector<8x1xf32>
    %c0_146 = arith.constant 0 : index
    %c24_147 = arith.constant 24 : index
    %c0_148 = arith.constant 0 : index
    %291 = vector.load %arg4[%c0_146, %c24_147, %c0_148] : memref<1x32x128xf32, #tpu.memory_space<vmem>>, vector<1x1x128xf32>
    %292 = vector.shape_cast %291 : vector<1x1x128xf32> to vector<1x128xf32>
    %293 = vector.broadcast %290 : vector<8x1xf32> to vector<8x128xf32>
    %294 = vector.broadcast %292 : vector<1x128xf32> to vector<8x128xf32>
    %295 = arith.addf %293, %294 : vector<8x128xf32>
    %296 = math.tanh %295 : vector<8x128xf32>
    %c24_149 = arith.constant 24 : index
    %297 = memref.load %arg2[%c24_149] : memref<32xf32, #tpu.memory_space<smem>>
    %298 = vector.broadcast %297 : f32 to vector<8x128xf32>
    %299 = arith.mulf %298, %296 : vector<8x128xf32>
    %300 = arith.addf %288, %299 : vector<8x128xf32>
    %c0_150 = arith.constant 0 : index
    %c0_151 = arith.constant 0 : index
    %c25 = arith.constant 25 : index
    %301 = vector.load %arg3[%c0_150, %c0_151, %c25] : memref<1x8x32xf32, #tpu.memory_space<vmem>>, vector<1x8x1xf32>
    %302 = vector.shape_cast %301 : vector<1x8x1xf32> to vector<8x1xf32>
    %c0_152 = arith.constant 0 : index
    %c25_153 = arith.constant 25 : index
    %c0_154 = arith.constant 0 : index
    %303 = vector.load %arg4[%c0_152, %c25_153, %c0_154] : memref<1x32x128xf32, #tpu.memory_space<vmem>>, vector<1x1x128xf32>
    %304 = vector.shape_cast %303 : vector<1x1x128xf32> to vector<1x128xf32>
    %305 = vector.broadcast %302 : vector<8x1xf32> to vector<8x128xf32>
    %306 = vector.broadcast %304 : vector<1x128xf32> to vector<8x128xf32>
    %307 = arith.addf %305, %306 : vector<8x128xf32>
    %308 = math.tanh %307 : vector<8x128xf32>
    %c25_155 = arith.constant 25 : index
    %309 = memref.load %arg2[%c25_155] : memref<32xf32, #tpu.memory_space<smem>>
    %310 = vector.broadcast %309 : f32 to vector<8x128xf32>
    %311 = arith.mulf %310, %308 : vector<8x128xf32>
    %312 = arith.addf %300, %311 : vector<8x128xf32>
    %c0_156 = arith.constant 0 : index
    %c0_157 = arith.constant 0 : index
    %c26 = arith.constant 26 : index
    %313 = vector.load %arg3[%c0_156, %c0_157, %c26] : memref<1x8x32xf32, #tpu.memory_space<vmem>>, vector<1x8x1xf32>
    %314 = vector.shape_cast %313 : vector<1x8x1xf32> to vector<8x1xf32>
    %c0_158 = arith.constant 0 : index
    %c26_159 = arith.constant 26 : index
    %c0_160 = arith.constant 0 : index
    %315 = vector.load %arg4[%c0_158, %c26_159, %c0_160] : memref<1x32x128xf32, #tpu.memory_space<vmem>>, vector<1x1x128xf32>
    %316 = vector.shape_cast %315 : vector<1x1x128xf32> to vector<1x128xf32>
    %317 = vector.broadcast %314 : vector<8x1xf32> to vector<8x128xf32>
    %318 = vector.broadcast %316 : vector<1x128xf32> to vector<8x128xf32>
    %319 = arith.addf %317, %318 : vector<8x128xf32>
    %320 = math.tanh %319 : vector<8x128xf32>
    %c26_161 = arith.constant 26 : index
    %321 = memref.load %arg2[%c26_161] : memref<32xf32, #tpu.memory_space<smem>>
    %322 = vector.broadcast %321 : f32 to vector<8x128xf32>
    %323 = arith.mulf %322, %320 : vector<8x128xf32>
    %324 = arith.addf %312, %323 : vector<8x128xf32>
    %c0_162 = arith.constant 0 : index
    %c0_163 = arith.constant 0 : index
    %c27 = arith.constant 27 : index
    %325 = vector.load %arg3[%c0_162, %c0_163, %c27] : memref<1x8x32xf32, #tpu.memory_space<vmem>>, vector<1x8x1xf32>
    %326 = vector.shape_cast %325 : vector<1x8x1xf32> to vector<8x1xf32>
    %c0_164 = arith.constant 0 : index
    %c27_165 = arith.constant 27 : index
    %c0_166 = arith.constant 0 : index
    %327 = vector.load %arg4[%c0_164, %c27_165, %c0_166] : memref<1x32x128xf32, #tpu.memory_space<vmem>>, vector<1x1x128xf32>
    %328 = vector.shape_cast %327 : vector<1x1x128xf32> to vector<1x128xf32>
    %329 = vector.broadcast %326 : vector<8x1xf32> to vector<8x128xf32>
    %330 = vector.broadcast %328 : vector<1x128xf32> to vector<8x128xf32>
    %331 = arith.addf %329, %330 : vector<8x128xf32>
    %332 = math.tanh %331 : vector<8x128xf32>
    %c27_167 = arith.constant 27 : index
    %333 = memref.load %arg2[%c27_167] : memref<32xf32, #tpu.memory_space<smem>>
    %334 = vector.broadcast %333 : f32 to vector<8x128xf32>
    %335 = arith.mulf %334, %332 : vector<8x128xf32>
    %336 = arith.addf %324, %335 : vector<8x128xf32>
    %c0_168 = arith.constant 0 : index
    %c0_169 = arith.constant 0 : index
    %c28 = arith.constant 28 : index
    %337 = vector.load %arg3[%c0_168, %c0_169, %c28] : memref<1x8x32xf32, #tpu.memory_space<vmem>>, vector<1x8x1xf32>
    %338 = vector.shape_cast %337 : vector<1x8x1xf32> to vector<8x1xf32>
    %c0_170 = arith.constant 0 : index
    %c28_171 = arith.constant 28 : index
    %c0_172 = arith.constant 0 : index
    %339 = vector.load %arg4[%c0_170, %c28_171, %c0_172] : memref<1x32x128xf32, #tpu.memory_space<vmem>>, vector<1x1x128xf32>
    %340 = vector.shape_cast %339 : vector<1x1x128xf32> to vector<1x128xf32>
    %341 = vector.broadcast %338 : vector<8x1xf32> to vector<8x128xf32>
    %342 = vector.broadcast %340 : vector<1x128xf32> to vector<8x128xf32>
    %343 = arith.addf %341, %342 : vector<8x128xf32>
    %344 = math.tanh %343 : vector<8x128xf32>
    %c28_173 = arith.constant 28 : index
    %345 = memref.load %arg2[%c28_173] : memref<32xf32, #tpu.memory_space<smem>>
    %346 = vector.broadcast %345 : f32 to vector<8x128xf32>
    %347 = arith.mulf %346, %344 : vector<8x128xf32>
    %348 = arith.addf %336, %347 : vector<8x128xf32>
    %c0_174 = arith.constant 0 : index
    %c0_175 = arith.constant 0 : index
    %c29 = arith.constant 29 : index
    %349 = vector.load %arg3[%c0_174, %c0_175, %c29] : memref<1x8x32xf32, #tpu.memory_space<vmem>>, vector<1x8x1xf32>
    %350 = vector.shape_cast %349 : vector<1x8x1xf32> to vector<8x1xf32>
    %c0_176 = arith.constant 0 : index
    %c29_177 = arith.constant 29 : index
    %c0_178 = arith.constant 0 : index
    %351 = vector.load %arg4[%c0_176, %c29_177, %c0_178] : memref<1x32x128xf32, #tpu.memory_space<vmem>>, vector<1x1x128xf32>
    %352 = vector.shape_cast %351 : vector<1x1x128xf32> to vector<1x128xf32>
    %353 = vector.broadcast %350 : vector<8x1xf32> to vector<8x128xf32>
    %354 = vector.broadcast %352 : vector<1x128xf32> to vector<8x128xf32>
    %355 = arith.addf %353, %354 : vector<8x128xf32>
    %356 = math.tanh %355 : vector<8x128xf32>
    %c29_179 = arith.constant 29 : index
    %357 = memref.load %arg2[%c29_179] : memref<32xf32, #tpu.memory_space<smem>>
    %358 = vector.broadcast %357 : f32 to vector<8x128xf32>
    %359 = arith.mulf %358, %356 : vector<8x128xf32>
    %360 = arith.addf %348, %359 : vector<8x128xf32>
    %c0_180 = arith.constant 0 : index
    %c0_181 = arith.constant 0 : index
    %c30 = arith.constant 30 : index
    %361 = vector.load %arg3[%c0_180, %c0_181, %c30] : memref<1x8x32xf32, #tpu.memory_space<vmem>>, vector<1x8x1xf32>
    %362 = vector.shape_cast %361 : vector<1x8x1xf32> to vector<8x1xf32>
    %c0_182 = arith.constant 0 : index
    %c30_183 = arith.constant 30 : index
    %c0_184 = arith.constant 0 : index
    %363 = vector.load %arg4[%c0_182, %c30_183, %c0_184] : memref<1x32x128xf32, #tpu.memory_space<vmem>>, vector<1x1x128xf32>
    %364 = vector.shape_cast %363 : vector<1x1x128xf32> to vector<1x128xf32>
    %365 = vector.broadcast %362 : vector<8x1xf32> to vector<8x128xf32>
    %366 = vector.broadcast %364 : vector<1x128xf32> to vector<8x128xf32>
    %367 = arith.addf %365, %366 : vector<8x128xf32>
    %368 = math.tanh %367 : vector<8x128xf32>
    %c30_185 = arith.constant 30 : index
    %369 = memref.load %arg2[%c30_185] : memref<32xf32, #tpu.memory_space<smem>>
    %370 = vector.broadcast %369 : f32 to vector<8x128xf32>
    %371 = arith.mulf %370, %368 : vector<8x128xf32>
    %372 = arith.addf %360, %371 : vector<8x128xf32>
    %c0_186 = arith.constant 0 : index
    %c0_187 = arith.constant 0 : index
    %c31 = arith.constant 31 : index
    %373 = vector.load %arg3[%c0_186, %c0_187, %c31] : memref<1x8x32xf32, #tpu.memory_space<vmem>>, vector<1x8x1xf32>
    %374 = vector.shape_cast %373 : vector<1x8x1xf32> to vector<8x1xf32>
    %c0_188 = arith.constant 0 : index
    %c31_189 = arith.constant 31 : index
    %c0_190 = arith.constant 0 : index
    %375 = vector.load %arg4[%c0_188, %c31_189, %c0_190] : memref<1x32x128xf32, #tpu.memory_space<vmem>>, vector<1x1x128xf32>
    %376 = vector.shape_cast %375 : vector<1x1x128xf32> to vector<1x128xf32>
    %377 = vector.broadcast %374 : vector<8x1xf32> to vector<8x128xf32>
    %378 = vector.broadcast %376 : vector<1x128xf32> to vector<8x128xf32>
    %379 = arith.addf %377, %378 : vector<8x128xf32>
    %380 = math.tanh %379 : vector<8x128xf32>
    %c31_191 = arith.constant 31 : index
    %381 = memref.load %arg2[%c31_191] : memref<32xf32, #tpu.memory_space<smem>>
    %382 = vector.broadcast %381 : f32 to vector<8x128xf32>
    %383 = arith.mulf %382, %380 : vector<8x128xf32>
    %384 = arith.addf %372, %383 : vector<8x128xf32>
    %c0_192 = arith.constant 0 : index
    %c0_193 = arith.constant 0 : index
    %385 = vector.load %arg9[%c0_192, %c0_193] : memref<8x128xf32, #tpu.memory_space<vmem>>, vector<8x128xf32>
    tpu.vector_store %arg9[%c0_192, %c0_193], %384 {strides = array<i32>} : memref<8x128xf32, #tpu.memory_space<vmem>>, vector<8x128xf32>,
    %c0_194 = arith.constant 0 : index
    %c0_195 = arith.constant 0 : index
    %386 = vector.load %arg9[%c0_194, %c0_195] : memref<8x128xf32, #tpu.memory_space<vmem>>, vector<8x128xf32>
    %c0_196 = arith.constant 0 : index
    %c0_197 = arith.constant 0 : index
    %c0_198 = arith.constant 0 : index
    %387 = vector.load %arg5[%c0_196, %c0_197, %c0_198] : memref<1x1x128xf32, #tpu.memory_space<vmem>>, vector<1x1x128xf32>
    %388 = vector.shape_cast %387 : vector<1x1x128xf32> to vector<1x128xf32>
    %389 = vector.broadcast %388 : vector<1x128xf32> to vector<8x128xf32>
    %390 = arith.addf %386, %389 : vector<8x128xf32>
    %cst_199 = arith.constant dense<0xFF800000> : vector<8xf32>
    %391 = vector.multi_reduction <maximumf>, %390, %cst_199 [1] : vector<8x128xf32> to vector<8xf32>
    %392 = vector.shape_cast %391 : vector<8xf32> to vector<8x1xf32>
    %393 = vector.broadcast %392 : vector<8x1xf32> to vector<8x128xf32>
    %394 = arith.subf %390, %393 : vector<8x128xf32>
    %395 = math.exp %394 : vector<8x128xf32>
    %cst_200 = arith.constant dense<0.000000e+00> : vector<8xf32>
    %396 = vector.multi_reduction <add>, %395, %cst_200 [1] : vector<8x128xf32> to vector<8xf32>
    %397 = vector.shape_cast %396 : vector<8xf32> to vector<8x1xf32>
    %398 = tpu.reciprocal %397 {approx = true} : vector<8x1xf32> -> vector<8x1xf32>
    %399 = arith.mulf %397, %398 : vector<8x1xf32>
    %cst_201 = arith.constant 2.000000e+00 : f32
    %400 = vector.broadcast %cst_201 : f32 to vector<8x1xf32>
    %401 = arith.subf %400, %399 : vector<8x1xf32>
    %402 = arith.mulf %398, %401 : vector<8x1xf32>
    %403 = arith.mulf %397, %402 : vector<8x1xf32>
    %cst_202 = arith.constant 2.000000e+00 : f32
    %404 = vector.broadcast %cst_202 : f32 to vector<8x1xf32>
    %405 = arith.subf %404, %403 : vector<8x1xf32>
    %406 = arith.mulf %402, %405 : vector<8x1xf32>
    %407 = vector.broadcast %406 : vector<8x1xf32> to vector<8x128xf32>
    %408 = arith.mulf %395, %407 : vector<8x128xf32>
    %c0_203 = arith.constant 0 : index
    %c0_204 = arith.constant 0 : index
    %c0_205 = arith.constant 0 : index
    %409 = vector.load %arg8[%c0_203, %c0_204, %c0_205] : memref<1x8x128xf32, #tpu.memory_space<vmem>>, vector<1x8x128xf32>
    %410 = vector.shape_cast %409 : vector<1x8x128xf32> to vector<8x128xf32>
    %411 = vector.shape_cast %408 : vector<8x128xf32> to vector<1x8x128xf32>
    tpu.vector_store %arg8[%c0_203, %c0_204, %c0_205], %411 {strides = array<i32>} : memref<1x8x128xf32, #tpu.memory_space<vmem>>, vector<1x8x128xf32>,
    %c0_206 = arith.constant 0 : index
    %c0_207 = arith.constant 0 : index
    %c0_208 = arith.constant 0 : index
    %412 = vector.load %arg6[%c0_206, %c0_207, %c0_208] : memref<1x128x128xf32, #tpu.memory_space<vmem>>, vector<1x128x128xf32>
    %413 = vector.shape_cast %412 : vector<1x128x128xf32> to vector<128x128xf32>
    %cst_209 = arith.constant dense<0.000000e+00> : vector<8x128xf32>
    %414 = tpu.matmul %408, %413, %cst_209 {dimension_numbers = #tpu.dot_dimension_numbers<[1], [0], [0], [1], [0, 0, 1, 1], [], []>} : vector<8x128xf32>, vector<128x128xf32>, vector<8x128xf32> -> vector<8x128xf32>
    %c0_210 = arith.constant 0 : index
    %c0_211 = arith.constant 0 : index
    %c0_212 = arith.constant 0 : index
    %415 = vector.load %arg7[%c0_210, %c0_211, %c0_212] : memref<1x8x128xf32, #tpu.memory_space<vmem>>, vector<1x8x128xf32>
    %416 = vector.shape_cast %415 : vector<1x8x128xf32> to vector<8x128xf32>
    %417 = vector.shape_cast %414 : vector<8x128xf32> to vector<1x8x128xf32>
    tpu.vector_store %arg7[%c0_210, %c0_211, %c0_212], %417 {strides = array<i32>} : memref<1x8x128xf32, #tpu.memory_space<vmem>>, vector<1x8x128xf32>,
    return
  }
  func.func @transform_0(%arg0: i32, %arg1: i32, %arg2: memref<32xf32, #tpu.memory_space<smem>>) -> (i32, i32, i32) {
    %c0_i32 = arith.constant 0 : i32
    %c0_i32_0 = arith.constant 0 : i32
    return %arg0, %arg1, %c0_i32 : i32, i32, i32
  }
  func.func @transform_1(%arg0: i32, %arg1: i32, %arg2: memref<32xf32, #tpu.memory_space<smem>>) -> (i32, i32, i32) {
    %c0_i32 = arith.constant 0 : i32
    %c0_i32_0 = arith.constant 0 : i32
    %c0_i32_1 = arith.constant 0 : i32
    return %arg0, %c0_i32, %c0_i32_0 : i32, i32, i32
  }
  func.func @transform_2(%arg0: i32, %arg1: i32, %arg2: memref<32xf32, #tpu.memory_space<smem>>) -> (i32, i32, i32) {
    %c0_i32 = arith.constant 0 : i32
    %c0_i32_0 = arith.constant 0 : i32
    %c0_i32_1 = arith.constant 0 : i32
    return %arg0, %c0_i32, %c0_i32_0 : i32, i32, i32
  }
  func.func @transform_3(%arg0: i32, %arg1: i32, %arg2: memref<32xf32, #tpu.memory_space<smem>>) -> (i32, i32, i32) {
    %c0_i32 = arith.constant 0 : i32
    %c0_i32_0 = arith.constant 0 : i32
    %c0_i32_1 = arith.constant 0 : i32
    return %arg0, %c0_i32, %c0_i32_0 : i32, i32, i32
  }
  func.func @transform_4(%arg0: i32, %arg1: i32, %arg2: memref<32xf32, #tpu.memory_space<smem>>) -> (i32, i32, i32) {
    %c0_i32 = arith.constant 0 : i32
    %c0_i32_0 = arith.constant 0 : i32
    return %arg0, %arg1, %c0_i32 : i32, i32, i32
  }
  func.func @transform_5(%arg0: i32, %arg1: i32, %arg2: memref<32xf32, #tpu.memory_space<smem>>) -> (i32, i32, i32) {
    %c0_i32 = arith.constant 0 : i32
    %c0_i32_0 = arith.constant 0 : i32
    return %arg0, %arg1, %c0_i32 : i32, i32, i32
  }
}

</mosaic_0001>

<llo_original>
// kernel: tpu_custom_call.1
$region0: #{tpu_custom_call.1}
  #allocation0 [shape = 'u32[]', space=smem, size = 0x4, offset = 0x4, fixed_abs, tag = 'smem constant byte address 0x4 - core index']
  #allocation1 [shape = 'u32[72,128]{1,0:T(1,128)}', space=vmem, size = 0x9000, scoped, tag = 'internal scratch']
  #allocation2 [shape = 'f32[8,128]{1,0:T(8,128)}', space=vmem, size = 0x1000, scoped, tag = 'scratch operand']
  #allocation3 [shape = 's32[1]{0}', space=sflag, size = 0x4, scoped, tag = 'scoped memory for tpu_custom_call.1']
  #allocation4 [shape = 'u8[512]{0}', space=smem, size = 0x200, scoped, tag = 'prefetched SMEM operand 0']
  %s0 = inlined_call_operand.hbm [shape: f32[32], index: 0, kind: input, shape index: {}]
  %s1 = inlined_call_operand.hbm [shape: f32[2,8,32], index: 1, kind: input, shape index: {}]
  %s2 = inlined_call_operand.hbm [shape: f32[2,32,128], index: 2, kind: input, shape index: {}]
  %s3 = inlined_call_operand.vmem [shape: f32[2,1,128], index: 3, kind: input, shape index: {}]
  %s4 = inlined_call_operand.hbm [shape: f32[2,128,128], index: 4, kind: input, shape index: {}]
  %s5 = inlined_call_operand.hbm [shape: f32[2,8,128], index: 5, kind: output, shape index: {0}]
  %s6 = inlined_call_operand.hbm [shape: f32[2,8,128], index: 6, kind: output, shape index: {1}]
  %7 = xla_tuple %s5, %s6
  %s8 = sld [smem:[#allocation0]]
  $region69: #{tpu_custom_call.1} parent=0
    _
  %s10 = ssub.s32 1, %s8
  %s11 = scalar_select 0, %s10, %s8
  %s13 = sshll.u32 %s0, 4
  %s14 = int_to_ptr.hbm [resolvable:$true] %s13
  %16 = dma.hbm_to_smem %s14, 16, [#allocation4], [#allocation3]
  %18 = dma.done [#allocation3], 16
  %19 = sfence
  $region1: #{tpu_custom_call.1} parent=0
    #allocation5 [shape = 'u8[8192]{0}', space=vmem, size = 0x2000, scoped, tag = 'input window, operand 1']
    #allocation6 [shape = 's32[2]{0}', space=sflag, size = 0x8, scoped, tag = 'scoped memory for tpu_custom_call.1']
    #allocation7 [shape = 's32[2]{0}', space=sflag, size = 0x8, scoped, tag = 'scoped memory for tpu_custom_call.1']
    #allocation8 [shape = 'u8[32768]{0}', space=vmem, size = 0x8000, scoped, tag = 'input window, operand 2']
    #allocation9 [shape = 's32[2]{0}', space=sflag, size = 0x8, scoped, tag = 'scoped memory for tpu_custom_call.1']
    #allocation10 [shape = 'u8[131072]{0}', space=vmem, size = 0x20000, scoped, tag = 'input window, operand 4']
    #allocation11 [shape = 'u8[8192]{0}', space=vmem, size = 0x2000, scoped, tag = 'output window, operand 0']
    #allocation12 [shape = 'u8[8192]{0}', space=vmem, size = 0x2000, scoped, tag = 'output window, operand 1']
    #allocation13 [shape = 's32[2]{0}', space=sflag, size = 0x8, scoped, tag = 'scoped memory for tpu_custom_call.1']
    %20 = vsyncpa [#allocation6], 0
    %s21 = scalar_lea.sflag [#allocation6], 1
    %22 = vsyncpa %s21, 0
    %23 = vsyncpa [#allocation9], 0
    %s24 = scalar_lea.sflag [#allocation9], 1
    %25 = vsyncpa %s24, 0
    %26 = vsyncpa [#allocation7], 0
    %s27 = scalar_lea.sflag [#allocation7], 1
    %28 = vsyncpa %s27, 0
    %29 = vsyncpa [#allocation13], 0
    %s30 = scalar_lea.sflag [#allocation13], 1
    %31 = vsyncpa %s30, 0
    loop: start=0, step=1, limit=4
    $region2: #{tpu_custom_call.1} parent=1 // loop_pre_header
      _
    $region3: #{tpu_custom_call.1} parent=1 // loop_header
      %s33 = sphi 0, %s37
      %p34 = scmp.ge.s32.totalorder %s33, 4
      %s40 = sphi 0, %s52
      %s41 = sphi 0, %s48
      %s42 = sphi 0, %s40
      %s43 = sphi 0, %s41
      %s44 = sphi 0, %s42
      %s45 = sphi 0, %s43
      %s57 = sphi 0, %s59
      %s60 = sphi 0, %s57
      %s61 = sphi 0, %s60
      %s77 = sphi 0, %s61
      %s83 = sphi 0, %s85
      %s86 = sphi 0, %s83
      %s87 = sphi 0, %s86
      %s103 = sphi 0, %s87
      %s109 = sphi 0, %s111
      %s112 = sphi 0, %s109
      %s113 = sphi 0, %s112
      %s129 = sphi 0, %s113
      %s135 = sphi 0, %s137
      %s138 = sphi 0, %s135
      %s139 = sphi 0, %s138
      %s155 = sphi 0, %s139
      %s163 = sphi 0, %s165
      %s166 = sphi 0, %s163
      %s167 = sphi 0, %s166
      %s183 = sphi 0, %s167
      %s191 = sphi 0, %s193
      %s194 = sphi 0, %s191
      %s195 = sphi 0, %s194
      %s211 = sphi 0, %s195
    $region4: #{tpu_custom_call.1} parent=1 // loop_header_branch
      %36 = sbr.rel (%p34) target = $region8
    $region5: #{tpu_custom_call.1} parent=1 // loop_body
      %s38 = ssub.s32 %s33, 1
      %s39 = ssub.s32 %s33, 2
      %s46 = sadd.s32 1, %s41
      %p47 = scmp.ge.s32.totalorder %s46, 1
      %s48 = scalar_select %p47, 0, %s46
      %s49 = sadd.s32 1, %s40
      %s50 = scalar_select %p47, %s49, %s40
      %p51 = scmp.ge.s32.totalorder %s50, 2
      %s52 = scalar_select %p51, 0, %s50
      %s53 = ssub.s32 %s40, %s52
      %s54 = ssub.s32 %s41, %s48
      %s55 = sor.u32 %s53, %s54
      %p56 = scmp.eq.s32.totalorder %s55, 0
      %s58 = sadd.s32 %s57, 1
      %s59 = scalar_select %p56, %s57, %s58
      %p62 = pneg %p56
      %p63 = scmp.eq.s32.totalorder %s33, 1
      %p64 = por %p62, %p63
      %p65 = scmp.ne.s32.totalorder %s57, %s60
      %p66 = scmp.eq.s32.totalorder %s33, 0
      %p67 = por %p65, %p66
      %p68 = scmp.ne.s32.totalorder %s57, %s60
      %p69 = scmp.eq.s32.totalorder %s38, 1
      %p70 = por %p68, %p69
      %p71 = scmp.ne.s32.totalorder %s60, %s61
      %p72 = scmp.eq.s32.totalorder %s38, 0
      %p73 = por %p71, %p72
      %p74 = scmp.ne.s32.totalorder %s60, %s61
      %p75 = scmp.eq.s32.totalorder %s39, 1
      %p76 = por %p74, %p75
      %p78 = scmp.ne.s32.totalorder %s61, %s77
      %p79 = scmp.eq.s32.totalorder %s39, 0
      %p80 = por %p78, %p79
      %s81 = ssub.s32 %s40, %s52
      %p82 = scmp.eq.s32.totalorder %s81, 0
      %s84 = sadd.s32 %s83, 1
      %s85 = scalar_select %p82, %s83, %s84
      %p88 = pneg %p82
      %p89 = scmp.eq.s32.totalorder %s33, 1
      %p90 = por %p88, %p89
      %p91 = scmp.ne.s32.totalorder %s83, %s86
      %p92 = scmp.eq.s32.totalorder %s33, 0
      %p93 = por %p91, %p92
      %p94 = scmp.ne.s32.totalorder %s83, %s86
      %p95 = scmp.eq.s32.totalorder %s38, 1
      %p96 = por %p94, %p95
      %p97 = scmp.ne.s32.totalorder %s86, %s87
      %p98 = scmp.eq.s32.totalorder %s38, 0
      %p99 = por %p97, %p98
      %p100 = scmp.ne.s32.totalorder %s86, %s87
      %p101 = scmp.eq.s32.totalorder %s39, 1
      %p102 = por %p100, %p101
      %p104 = scmp.ne.s32.totalorder %s87, %s103
      %p105 = scmp.eq.s32.totalorder %s39, 0
      %p106 = por %p104, %p105
      %s107 = ssub.s32 %s40, %s52
      %p108 = scmp.eq.s32.totalorder %s107, 0
      %s110 = sadd.s32 %s109, 1
      %s111 = scalar_select %p108, %s109, %s110
      %p114 = pneg %p108
      %p115 = scmp.eq.s32.totalorder %s33, 1
      %p116 = por %p114, %p115
      %p117 = scmp.ne.s32.totalorder %s109, %s112
      %p118 = scmp.eq.s32.totalorder %s33, 0
      %p119 = por %p117, %p118
      %p120 = scmp.ne.s32.totalorder %s109, %s112
      %p121 = scmp.eq.s32.totalorder %s38, 1
      %p122 = por %p120, %p121
      %p123 = scmp.ne.s32.totalorder %s112, %s113
      %p124 = scmp.eq.s32.totalorder %s38, 0
      %p125 = por %p123, %p124
      %p126 = scmp.ne.s32.totalorder %s112, %s113
      %p127 = scmp.eq.s32.totalorder %s39, 1
      %p128 = por %p126, %p127
      %p130 = scmp.ne.s32.totalorder %s113, %s129
      %p131 = scmp.eq.s32.totalorder %s39, 0
      %p132 = por %p130, %p131
      %s133 = ssub.s32 %s40, %s52
      %p134 = scmp.eq.s32.totalorder %s133, 0
      %s136 = sadd.s32 %s135, 1
      %s137 = scalar_select %p134, %s135, %s136
      %p140 = pneg %p134
      %p141 = scmp.eq.s32.totalorder %s33, 1
      %p142 = por %p140, %p141
      %p143 = scmp.ne.s32.totalorder %s135, %s138
      %p144 = scmp.eq.s32.totalorder %s33, 0
      %p145 = por %p143, %p144
      %p146 = scmp.ne.s32.totalorder %s135, %s138
      %p147 = scmp.eq.s32.totalorder %s38, 1
      %p148 = por %p146, %p147
      %p149 = scmp.ne.s32.totalorder %s138, %s139
      %p150 = scmp.eq.s32.totalorder %s38, 0
      %p151 = por %p149, %p150
      %p152 = scmp.ne.s32.totalorder %s138, %s139
      %p153 = scmp.eq.s32.totalorder %s39, 1
      %p154 = por %p152, %p153
      %p156 = scmp.ne.s32.totalorder %s139, %s155
      %p157 = scmp.eq.s32.totalorder %s39, 0
      %p158 = por %p156, %p157
      %s159 = ssub.s32 %s40, %s52
      %s160 = ssub.s32 %s41, %s48
      %s161 = sor.u32 %s159, %s160
      %p162 = scmp.eq.s32.totalorder %s161, 0
      %s164 = sadd.s32 %s163, 1
      %s165 = scalar_select %p162, %s163, %s164
      %p168 = pneg %p162
      %p169 = scmp.eq.s32.totalorder %s33, 1
      %p170 = por %p168, %p169
      %p171 = scmp.ne.s32.totalorder %s163, %s166
      %p172 = scmp.eq.s32.totalorder %s33, 0
      %p173 = por %p171, %p172
      %p174 = scmp.ne.s32.totalorder %s163, %s166
      %p175 = scmp.eq.s32.totalorder %s38, 1
      %p176 = por %p174, %p175
      %p177 = scmp.ne.s32.totalorder %s166, %s167
      %p178 = scmp.eq.s32.totalorder %s38, 0
      %p179 = por %p177, %p178
      %p180 = scmp.ne.s32.totalorder %s166, %s167
      %p181 = scmp.eq.s32.totalorder %s39, 1
      %p182 = por %p180, %p181
      %p184 = scmp.ne.s32.totalorder %s167, %s183
      %p185 = scmp.eq.s32.totalorder %s39, 0
      %p186 = por %p184, %p185
      %s187 = ssub.s32 %s40, %s52
      %s188 = ssub.s32 %s41, %s48
      %s189 = sor.u32 %s187, %s188
      %p190 = scmp.eq.s32.totalorder %s189, 0
      %s192 = sadd.s32 %s191, 1
      %s193 = scalar_select %p190, %s191, %s192
      %p196 = pneg %p190
      %p197 = scmp.eq.s32.totalorder %s33, 1
      %p198 = por %p196, %p197
      %p199 = scmp.ne.s32.totalorder %s191, %s194
      %p200 = scmp.eq.s32.totalorder %s33, 0
      %p201 = por %p199, %p200
      %p202 = scmp.ne.s32.totalorder %s191, %s194
      %p203 = scmp.eq.s32.totalorder %s38, 1
      %p204 = por %p202, %p203
      %p205 = scmp.ne.s32.totalorder %s194, %s195
      %p206 = scmp.eq.s32.totalorder %s38, 0
      %p207 = por %p205, %p206
      %p208 = scmp.ne.s32.totalorder %s194, %s195
      %p209 = scmp.eq.s32.totalorder %s39, 1
      %p210 = por %p208, %p209
      %p212 = scmp.ne.s32.totalorder %s195, %s211
      %p213 = scmp.eq.s32.totalorder %s39, 0
      %p214 = por %p212, %p213
      %p215 = scmp.le.s32.totalorder 1, %s33
      %p216 = scmp.lt.s32.totalorder %s33, 3
      %p217 = pnand %p215, %p216
      %p218 = pneg %p217
      // Predicated region
      $region9: #{tpu_custom_call.1} parent=5 // pred_check
        _
      $region10: #{tpu_custom_call.1} parent=5 // pred_check_branch
        %220 = sbr.rel (%p217) target = $region12
      $region11: #{tpu_custom_call.1} parent=5 // pred_region
        %s221 = ssub.s32 %s33, 1
      $region12: #{tpu_custom_call.1} parent=5 // pred_fallthru
        _
      %p222 = scmp.lt.s32.totalorder %s33, 2
      // Predicated region
      $region13: #{tpu_custom_call.1} parent=5 // pred_check
        %p223 = pneg %p222
      $region14: #{tpu_custom_call.1} parent=5 // pred_check_branch
        %225 = sbr.rel (%p223) target = $region16
      $region15: #{tpu_custom_call.1} parent=5 // pred_region
        // Predicated region
        $region17: #{tpu_custom_call.1} parent=15 // pred_check
          %p226 = pneg %p67
        $region18: #{tpu_custom_call.1} parent=15 // pred_check_branch
          %228 = sbr.rel (%p226) target = $region20
        $region19: #{tpu_custom_call.1} parent=15 // pred_region
          %s229 = sand.u32 %s57, 1
          %s230 = scalar_lea.sflag [#allocation6], %s229
          %s231 = sand.u32 %s57, 1
          %s232 = smul.addr %s231, 8
          %s233 = scalar_lea.vmem [#allocation5], %s232
          %235 = vsyncadd %s230, 0
          %s236 = sadd.s32 %s41, %s40
          %s237 = smul.addr %s236, 8
          %s238 = scalar_lea.hbm %s1, %s237
          %s240 = sshll.u32 %s238, 4
          %s241 = int_to_ptr.hbm [resolvable:$true] %s240
          %s242 = sshll.u32 %s233, 4
          %s243 = int_to_ptr.vmem [resolvable:$true] %s242
          %245 = dma.hbm_to_vmem [thread:$0]  %s241, 128, %s243, %s230
        $region20: #{tpu_custom_call.1} parent=15 // pred_fallthru
          _
        // Predicated region
        $region21: #{tpu_custom_call.1} parent=15 // pred_check
          %p246 = pneg %p93
        $region22: #{tpu_custom_call.1} parent=15 // pred_check_branch
          %248 = sbr.rel (%p246) target = $region24
        $region23: #{tpu_custom_call.1} parent=15 // pred_region
          %s249 = sand.u32 %s33, 1
          %s250 = scalar_lea.sflag [#allocation9], %s249
          %s251 = sand.u32 %s83, 1
          %s252 = smul.addr %s251, 32
          %s253 = scalar_lea.vmem [#allocation8], %s252
          %255 = vsyncadd %s250, 0
          %s256 = smul.addr %s40, 4
          %s257 = smul.addr %s256, 8
          %s258 = scalar_lea.hbm %s2, %s257
          %s259 = sshll.u32 %s258, 4
          %s260 = int_to_ptr.hbm [resolvable:$true] %s259
          %s261 = sshll.u32 %s253, 4
          %s262 = int_to_ptr.vmem [resolvable:$true] %s261
          %267 = dma.hbm_to_vmem [thread:$0]  %s260, 512, %s262, %s250, 128, 128, 8
        $region24: #{tpu_custom_call.1} parent=15 // pred_fallthru
          _
        // Predicated region
        $region25: #{tpu_custom_call.1} parent=15 // pred_check
          %p268 = pneg %p119
        $region26: #{tpu_custom_call.1} parent=15 // pred_check_branch
          %270 = sbr.rel (%p268) target = $region28
        $region27: #{tpu_custom_call.1} parent=15 // pred_region
          %p271 = scmp.lt.s32.totalorder %s40, 1
          %s272 = scalar_select %p271, %s40, 1
          %s273 = scalar_lea.vmem %s3, %s272
        $region28: #{tpu_custom_call.1} parent=15 // pred_fallthru
          _
        // Predicated region
        $region29: #{tpu_custom_call.1} parent=15 // pred_check
          %p274 = pneg %p145
        $region30: #{tpu_custom_call.1} parent=15 // pred_check_branch
          %276 = sbr.rel (%p274) target = $region32
        $region31: #{tpu_custom_call.1} parent=15 // pred_region
          %s277 = sand.u32 %s33, 1
          %s278 = scalar_lea.sflag [#allocation9], %s277
          %s279 = sand.u32 %s135, 1
          %s280 = smul.addr %s279, 128
          %s281 = scalar_lea.vmem [#allocation10], %s280
          %283 = vsyncadd %s278, 0
          %s284 = smul.addr %s40, 16
          %s285 = smul.addr %s284, 8
          %s286 = scalar_lea.hbm %s4, %s285
          %s287 = sshll.u32 %s286, 4
          %s288 = int_to_ptr.hbm [resolvable:$true] %s287
          %s289 = sshll.u32 %s281, 4
          %s290 = int_to_ptr.vmem [resolvable:$true] %s289
          %295 = dma.hbm_to_vmem [thread:$0]  %s288, 2048, %s290, %s278, 128, 128, 8
        $region32: #{tpu_custom_call.1} parent=15 // pred_fallthru
          _
      $region16: #{tpu_custom_call.1} parent=5 // pred_fallthru
        _
      %p296 = scmp.le.s32.totalorder 1, %s33
      %p297 = scmp.lt.s32.totalorder %s33, 3
      %p298 = pnand %p296, %p297
      %p299 = pneg %p298
      // Predicated region
      $region33: #{tpu_custom_call.1} parent=5 // pred_check
        _
      $region34: #{tpu_custom_call.1} parent=5 // pred_check_branch
        %301 = sbr.rel (%p298) target = $region36
      $region35: #{tpu_custom_call.1} parent=5 // pred_region
        %s302 = ssub.s32 %s33, 1
        %s303 = sand.u32 %s60, 1
        %s304 = scalar_lea.sflag [#allocation6], %s303
        %s305 = sand.u32 %s60, 1
        %s306 = smul.addr %s305, 8
        %s307 = scalar_lea.vmem [#allocation5], %s306
        // Predicated region
        $region37: #{tpu_custom_call.1} parent=35 // pred_check
          %p308 = pneg %p73
        $region38: #{tpu_custom_call.1} parent=35 // pred_check_branch
          %310 = sbr.rel (%p308) target = $region40
        $region39: #{tpu_custom_call.1} parent=35 // pred_region
          %312 = dma.done %s304, 128
        $region40: #{tpu_custom_call.1} parent=35 // pred_fallthru
          _
        %s313 = sand.u32 %s38, 1
        %s314 = scalar_lea.sflag [#allocation9], %s313
        %s315 = sand.u32 %s86, 1
        %s316 = smul.addr %s315, 32
        %s317 = scalar_lea.vmem [#allocation8], %s316
        // Predicated region
        $region41: #{tpu_custom_call.1} parent=35 // pred_check
          %p318 = pneg %p99
        $region42: #{tpu_custom_call.1} parent=35 // pred_check_branch
          %320 = sbr.rel (%p318) target = $region44
        $region43: #{tpu_custom_call.1} parent=35 // pred_region
          %322 = dma.done %s314, 512
        $region44: #{tpu_custom_call.1} parent=35 // pred_fallthru
          _
        %s323 = sand.u32 %s38, 1
        %s324 = scalar_lea.sflag [#allocation9], %s323
        %s325 = sand.u32 %s138, 1
        %s326 = smul.addr %s325, 128
        %s327 = scalar_lea.vmem [#allocation10], %s326
        // Predicated region
        $region45: #{tpu_custom_call.1} parent=35 // pred_check
          %p328 = pneg %p151
        $region46: #{tpu_custom_call.1} parent=35 // pred_check_branch
          %330 = sbr.rel (%p328) target = $region48
        $region47: #{tpu_custom_call.1} parent=35 // pred_region
          %332 = dma.done %s324, 2048
        $region48: #{tpu_custom_call.1} parent=35 // pred_fallthru
          _
        %s333 = sand.u32 %s60, 1
        %s334 = scalar_lea.sflag [#allocation6], %s333
        %s335 = sand.u32 %s60, 1
        %s336 = smul.addr %s335, 8
        %s337 = scalar_lea.vmem [#allocation5], %s336
        %p338 = pneg %p73
        %p339 = pneg %p70
        %s340 = sand.u32 %s38, 1
        %s341 = scalar_lea.sflag [#allocation9], %s340
        %s342 = sand.u32 %s86, 1
        %s343 = smul.addr %s342, 32
        %s344 = scalar_lea.vmem [#allocation8], %s343
        %p345 = pneg %p99
        %p346 = pneg %p96
        %p347 = scmp.lt.s32.totalorder %s42, 1
        %s348 = scalar_select %p347, %s42, 1
        %s349 = scalar_lea.vmem %s3, %s348
        %p350 = pneg %p125
        %p351 = pneg %p122
        %s352 = sand.u32 %s38, 1
        %s353 = scalar_lea.sflag [#allocation9], %s352
        %s354 = sand.u32 %s138, 1
        %s355 = smul.addr %s354, 128
        %s356 = scalar_lea.vmem [#allocation10], %s355
        %p357 = pneg %p151
        %p358 = pneg %p148
        %p359 = pneg %p179
        %p360 = pneg %p176
        %s361 = sand.u32 %s166, 1
        %s362 = scalar_lea.sflag [#allocation7], %s361
        %s363 = sand.u32 %s166, 1
        %s364 = smul.addr %s363, 8
        %s365 = scalar_lea.vmem [#allocation11], %s364
        %p366 = pneg %p207
        %p367 = pneg %p204
        %s368 = sand.u32 %s194, 1
        %s369 = scalar_lea.sflag [#allocation13], %s368
        %s370 = sand.u32 %s194, 1
        %s371 = smul.addr %s370, 8
        %s372 = scalar_lea.vmem [#allocation12], %s371
        %p373 = scmp.lt.s32.totalorder %s42, 1
        %s374 = scalar_select %p373, %s42, 1
        %s375 = scalar_lea.vmem %s3, %s374
        %v376 = vld [vmem:[%s307] sm:$0xff]
        %v377 = vld [vmem:[%s317] sm:$0x1]
        %379 = vset.pattern.permute.xlu0 0
        %380 = vperm.xlu0 %379, %v376
        %v381 = vpop.permute.xlu0 %380
        %v383 = vperm.slane %v377, 0
        %v384 = vadd.f32 %v381, %v383
        %v385 = vtanh.pop %v384
        %s386 = sld [smem:[#allocation4]]
        %v387 = vstv %s386
        %v388 = vmul.f32 %v387, %v385
        %v389 = vadd.f32 %v388, 0.0
        %v390 = vld [vmem:[%s317 + $0x1] sm:$0x1]
        %391 = vset.pattern.permute.xlu0 1
        %392 = vperm.xlu0 %391, %v376
        %v393 = vpop.permute.xlu0 %392
        %v395 = vperm.slane %v390, 0
        %v396 = vadd.f32 %v393, %v395
        %v397 = vtanh.pop %v396
        %s398 = sld [smem:[#allocation4 + $0x1]]
        %v399 = vstv %s398
        %v400 = vmul.f32 %v399, %v397
        %v401 = vadd.f32 %v389, %v400
        %v402 = vld [vmem:[%s317 + $0x2] sm:$0x1]
        %403 = vset.pattern.permute.xlu0 2
        %404 = vperm.xlu0 %403, %v376
        %v405 = vpop.permute.xlu0 %404
        %v407 = vperm.slane %v402, 0
        %v408 = vadd.f32 %v405, %v407
        %v409 = vtanh.pop %v408
        %s410 = sld [smem:[#allocation4 + $0x2]]
        %v411 = vstv %s410
        %v412 = vmul.f32 %v411, %v409
        %v413 = vadd.f32 %v401, %v412
        %v414 = vld [vmem:[%s317 + $0x3] sm:$0x1]
        %415 = vset.pattern.permute.xlu0 3
        %416 = vperm.xlu0 %415, %v376
        %v417 = vpop.permute.xlu0 %416
        %v419 = vperm.slane %v414, 0
        %v420 = vadd.f32 %v417, %v419
        %v421 = vtanh.pop %v420
        %s422 = sld [smem:[#allocation4 + $0x3]]
        %v423 = vstv %s422
        %v424 = vmul.f32 %v423, %v421
        %v425 = vadd.f32 %v413, %v424
        %v426 = vld [vmem:[%s317 + $0x4] sm:$0x1]
        %427 = vset.pattern.permute.xlu0 4
        %428 = vperm.xlu0 %427, %v376
        %v429 = vpop.permute.xlu0 %428
        %v431 = vperm.slane %v426, 0
        %v432 = vadd.f32 %v429, %v431
        %v433 = vtanh.pop %v432
        %s434 = sld [smem:[#allocation4 + $0x4]]
        %v435 = vstv %s434
        %v436 = vmul.f32 %v435, %v433
        %v437 = vadd.f32 %v425, %v436
        %v438 = vld [vmem:[%s317 + $0x5] sm:$0x1]
        %439 = vset.pattern.permute.xlu0 5
        %440 = vperm.xlu0 %439, %v376
        %v441 = vpop.permute.xlu0 %440
        %v443 = vperm.slane %v438, 0
        %v444 = vadd.f32 %v441, %v443
        %v445 = vtanh.pop %v444
        %s446 = sld [smem:[#allocation4 + $0x5]]
        %v447 = vstv %s446
        %v448 = vmul.f32 %v447, %v445
        %v449 = vadd.f32 %v437, %v448
        %v450 = vld [vmem:[%s317 + $0x6] sm:$0x1]
        %451 = vset.pattern.permute.xlu0 6
        %452 = vperm.xlu0 %451, %v376
        %v453 = vpop.permute.xlu0 %452
        %v455 = vperm.slane %v450, 0
        %v456 = vadd.f32 %v453, %v455
        %v457 = vtanh.pop %v456
        %s458 = sld [smem:[#allocation4 + $0x6]]
        %v459 = vstv %s458
        %v460 = vmul.f32 %v459, %v457
        %v461 = vadd.f32 %v449, %v460
        %v462 = vld [vmem:[%s317 + $0x7] sm:$0x1]
        %463 = vset.pattern.permute.xlu0 7
        %464 = vperm.xlu0 %463, %v376
        %v465 = vpop.permute.xlu0 %464
        %v467 = vperm.slane %v462, 0
        %v468 = vadd.f32 %v465, %v467
        %v469 = vtanh.pop %v468
        %s470 = sld [smem:[#allocation4 + $0x7]]
        %v471 = vstv %s470
        %v472 = vmul.f32 %v471, %v469
        %v473 = vadd.f32 %v461, %v472
        %v474 = vld [vmem:[%s317 + $0x8] sm:$0x1]
        %475 = vset.pattern.permute.xlu0 8
        %476 = vperm.xlu0 %475, %v376
        %v477 = vpop.permute.xlu0 %476
        %v479 = vperm.slane %v474, 0
        %v480 = vadd.f32 %v477, %v479
        %v481 = vtanh.pop %v480
        %s482 = sld [smem:[#allocation4 + $0x8]]
        %v483 = vstv %s482
        %v484 = vmul.f32 %v483, %v481
        %v485 = vadd.f32 %v473, %v484
        %v486 = vld [vmem:[%s317 + $0x9] sm:$0x1]
        %487 = vset.pattern.permute.xlu0 9
        %488 = vperm.xlu0 %487, %v376
        %v489 = vpop.permute.xlu0 %488
        %v491 = vperm.slane %v486, 0
        %v492 = vadd.f32 %v489, %v491
        %v493 = vtanh.pop %v492
        %s494 = sld [smem:[#allocation4 + $0x9]]
        %v495 = vstv %s494
        %v496 = vmul.f32 %v495, %v493
        %v497 = vadd.f32 %v485, %v496
        %v498 = vld [vmem:[%s317 + $0xa] sm:$0x1]
        %499 = vset.pattern.permute.xlu0 10
        %500 = vperm.xlu0 %499, %v376
        %v501 = vpop.permute.xlu0 %500
        %v503 = vperm.slane %v498, 0
        %v504 = vadd.f32 %v501, %v503
        %v505 = vtanh.pop %v504
        %s506 = sld [smem:[#allocation4 + $0xa]]
        %v507 = vstv %s506
        %v508 = vmul.f32 %v507, %v505
        %v509 = vadd.f32 %v497, %v508
        %v510 = vld [vmem:[%s317 + $0xb] sm:$0x1]
        %511 = vset.pattern.permute.xlu0 11
        %512 = vperm.xlu0 %511, %v376
        %v513 = vpop.permute.xlu0 %512
        %v515 = vperm.slane %v510, 0
        %v516 = vadd.f32 %v513, %v515
        %v517 = vtanh.pop %v516
        %s518 = sld [smem:[#allocation4 + $0xb]]
        %v519 = vstv %s518
        %v520 = vmul.f32 %v519, %v517
        %v521 = vadd.f32 %v509, %v520
        %v522 = vld [vmem:[%s317 + $0xc] sm:$0x1]
        %523 = vset.pattern.permute.xlu0 12
        %524 = vperm.xlu0 %523, %v376
        %v525 = vpop.permute.xlu0 %524
        %v527 = vperm.slane %v522, 0
        %v528 = vadd.f32 %v525, %v527
        %v529 = vtanh.pop %v528
        %s530 = sld [smem:[#allocation4 + $0xc]]
        %v531 = vstv %s530
        %v532 = vmul.f32 %v531, %v529
        %v533 = vadd.f32 %v521, %v532
        %v534 = vld [vmem:[%s317 + $0xd] sm:$0x1]
        %535 = vset.pattern.permute.xlu0 13
        %536 = vperm.xlu0 %535, %v376
        %v537 = vpop.permute.xlu0 %536
        %v539 = vperm.slane %v534, 0
        %v540 = vadd.f32 %v537, %v539
        %v541 = vtanh.pop %v540
        %s542 = sld [smem:[#allocation4 + $0xd]]
        %v543 = vstv %s542
        %v544 = vmul.f32 %v543, %v541
        %v545 = vadd.f32 %v533, %v544
        %v546 = vld [vmem:[%s317 + $0xe] sm:$0x1]
        %547 = vset.pattern.permute.xlu0 14
        %548 = vperm.xlu0 %547, %v376
        %v549 = vpop.permute.xlu0 %548
        %v551 = vperm.slane %v546, 0
        %v552 = vadd.f32 %v549, %v551
        %v553 = vtanh.pop %v552
        %s554 = sld [smem:[#allocation4 + $0xe]]
        %v555 = vstv %s554
        %v556 = vmul.f32 %v555, %v553
        %v557 = vadd.f32 %v545, %v556
        %v558 = vld [vmem:[%s317 + $0xf] sm:$0x1]
        %559 = vset.pattern.permute.xlu0 15
        %560 = vperm.xlu0 %559, %v376
        %v561 = vpop.permute.xlu0 %560
        %v563 = vperm.slane %v558, 0
        %v564 = vadd.f32 %v561, %v563
        %v565 = vtanh.pop %v564
        %s566 = sld [smem:[#allocation4 + $0xf]]
        %v567 = vstv %s566
        %v568 = vmul.f32 %v567, %v565
        %v569 = vadd.f32 %v557, %v568
        %v570 = vld [vmem:[%s317 + $0x10] sm:$0x1]
        %571 = vset.pattern.permute.xlu0 16
        %572 = vperm.xlu0 %571, %v376
        %v573 = vpop.permute.xlu0 %572
        %v575 = vperm.slane %v570, 0
        %v576 = vadd.f32 %v573, %v575
        %v577 = vtanh.pop %v576
        %s578 = sld [smem:[#allocation4 + $0x10]]
        %v579 = vstv %s578
        %v580 = vmul.f32 %v579, %v577
        %v581 = vadd.f32 %v569, %v580
        %v582 = vld [vmem:[%s317 + $0x11] sm:$0x1]
        %583 = vset.pattern.permute.xlu0 17
        %584 = vperm.xlu0 %583, %v376
        %v585 = vpop.permute.xlu0 %584
        %v587 = vperm.slane %v582, 0
        %v588 = vadd.f32 %v585, %v587
        %v589 = vtanh.pop %v588
        %s590 = sld [smem:[#allocation4 + $0x11]]
        %v591 = vstv %s590
        %v592 = vmul.f32 %v591, %v589
        %v593 = vadd.f32 %v581, %v592
        %v594 = vld [vmem:[%s317 + $0x12] sm:$0x1]
        %595 = vset.pattern.permute.xlu0 18
        %596 = vperm.xlu0 %595, %v376
        %v597 = vpop.permute.xlu0 %596
        %v599 = vperm.slane %v594, 0
        %v600 = vadd.f32 %v597, %v599
        %v601 = vtanh.pop %v600
        %s602 = sld [smem:[#allocation4 + $0x12]]
        %v603 = vstv %s602
        %v604 = vmul.f32 %v603, %v601
        %v605 = vadd.f32 %v593, %v604
        %v606 = vld [vmem:[%s317 + $0x13] sm:$0x1]
        %607 = vset.pattern.permute.xlu0 19
        %608 = vperm.xlu0 %607, %v376
        %v609 = vpop.permute.xlu0 %608
        %v611 = vperm.slane %v606, 0
        %v612 = vadd.f32 %v609, %v611
        %v613 = vtanh.pop %v612
        %s614 = sld [smem:[#allocation4 + $0x13]]
        %v615 = vstv %s614
        %v616 = vmul.f32 %v615, %v613
        %v617 = vadd.f32 %v605, %v616
        %v618 = vld [vmem:[%s317 + $0x14] sm:$0x1]
        %619 = vset.pattern.permute.xlu0 20
        %620 = vperm.xlu0 %619, %v376
        %v621 = vpop.permute.xlu0 %620
        %v623 = vperm.slane %v618, 0
        %v624 = vadd.f32 %v621, %v623
        %v625 = vtanh.pop %v624
        %s626 = sld [smem:[#allocation4 + $0x14]]
        %v627 = vstv %s626
        %v628 = vmul.f32 %v627, %v625
        %v629 = vadd.f32 %v617, %v628
        %v630 = vld [vmem:[%s317 + $0x15] sm:$0x1]
        %631 = vset.pattern.permute.xlu0 21
        %632 = vperm.xlu0 %631, %v376
        %v633 = vpop.permute.xlu0 %632
        %v635 = vperm.slane %v630, 0
        %v636 = vadd.f32 %v633, %v635
        %v637 = vtanh.pop %v636
        %s638 = sld [smem:[#allocation4 + $0x15]]
        %v639 = vstv %s638
        %v640 = vmul.f32 %v639, %v637
        %v641 = vadd.f32 %v629, %v640
        %v642 = vld [vmem:[%s317 + $0x16] sm:$0x1]
        %643 = vset.pattern.permute.xlu0 22
        %644 = vperm.xlu0 %643, %v376
        %v645 = vpop.permute.xlu0 %644
        %v647 = vperm.slane %v642, 0
        %v648 = vadd.f32 %v645, %v647
        %v649 = vtanh.pop %v648
        %s650 = sld [smem:[#allocation4 + $0x16]]
        %v651 = vstv %s650
        %v652 = vmul.f32 %v651, %v649
        %v653 = vadd.f32 %v641, %v652
        %v654 = vld [vmem:[%s317 + $0x17] sm:$0x1]
        %655 = vset.pattern.permute.xlu0 23
        %656 = vperm.xlu0 %655, %v376
        %v657 = vpop.permute.xlu0 %656
        %v659 = vperm.slane %v654, 0
        %v660 = vadd.f32 %v657, %v659
        %v661 = vtanh.pop %v660
        %s662 = sld [smem:[#allocation4 + $0x17]]
        %v663 = vstv %s662
        %v664 = vmul.f32 %v663, %v661
        %v665 = vadd.f32 %v653, %v664
        %v666 = vld [vmem:[%s317 + $0x18] sm:$0x1]
        %667 = vset.pattern.permute.xlu0 24
        %668 = vperm.xlu0 %667, %v376
        %v669 = vpop.permute.xlu0 %668
        %v671 = vperm.slane %v666, 0
        %v672 = vadd.f32 %v669, %v671
        %v673 = vtanh.pop %v672
        %s674 = sld [smem:[#allocation4 + $0x18]]
        %v675 = vstv %s674
        %v676 = vmul.f32 %v675, %v673
        %v677 = vadd.f32 %v665, %v676
        %v678 = vld [vmem:[%s317 + $0x19] sm:$0x1]
        %679 = vset.pattern.permute.xlu0 25
        %680 = vperm.xlu0 %679, %v376
        %v681 = vpop.permute.xlu0 %680
        %v683 = vperm.slane %v678, 0
        %v684 = vadd.f32 %v681, %v683
        %v685 = vtanh.pop %v684
        %s686 = sld [smem:[#allocation4 + $0x19]]
        %v687 = vstv %s686
        %v688 = vmul.f32 %v687, %v685
        %v689 = vadd.f32 %v677, %v688
        %v690 = vld [vmem:[%s317 + $0x1a] sm:$0x1]
        %691 = vset.pattern.permute.xlu0 26
        %692 = vperm.xlu0 %691, %v376
        %v693 = vpop.permute.xlu0 %692
        %v695 = vperm.slane %v690, 0
        %v696 = vadd.f32 %v693, %v695
        %v697 = vtanh.pop %v696
        %s698 = sld [smem:[#allocation4 + $0x1a]]
        %v699 = vstv %s698
        %v700 = vmul.f32 %v699, %v697
        %v701 = vadd.f32 %v689, %v700
        %v702 = vld [vmem:[%s317 + $0x1b] sm:$0x1]
        %703 = vset.pattern.permute.xlu0 27
        %704 = vperm.xlu0 %703, %v376
        %v705 = vpop.permute.xlu0 %704
        %v707 = vperm.slane %v702, 0
        %v708 = vadd.f32 %v705, %v707
        %v709 = vtanh.pop %v708
        %s710 = sld [smem:[#allocation4 + $0x1b]]
        %v711 = vstv %s710
        %v712 = vmul.f32 %v711, %v709
        %v713 = vadd.f32 %v701, %v712
        %v714 = vld [vmem:[%s317 + $0x1c] sm:$0x1]
        %715 = vset.pattern.permute.xlu0 28
        %716 = vperm.xlu0 %715, %v376
        %v717 = vpop.permute.xlu0 %716
        %v719 = vperm.slane %v714, 0
        %v720 = vadd.f32 %v717, %v719
        %v721 = vtanh.pop %v720
        %s722 = sld [smem:[#allocation4 + $0x1c]]
        %v723 = vstv %s722
        %v724 = vmul.f32 %v723, %v721
        %v725 = vadd.f32 %v713, %v724
        %v726 = vld [vmem:[%s317 + $0x1d] sm:$0x1]
        %727 = vset.pattern.permute.xlu0 29
        %728 = vperm.xlu0 %727, %v376
        %v729 = vpop.permute.xlu0 %728
        %v731 = vperm.slane %v726, 0
        %v732 = vadd.f32 %v729, %v731
        %v733 = vtanh.pop %v732
        %s734 = sld [smem:[#allocation4 + $0x1d]]
        %v735 = vstv %s734
        %v736 = vmul.f32 %v735, %v733
        %v737 = vadd.f32 %v725, %v736
        %v738 = vld [vmem:[%s317 + $0x1e] sm:$0x1]
        %739 = vset.pattern.permute.xlu0 30
        %740 = vperm.xlu0 %739, %v376
        %v741 = vpop.permute.xlu0 %740
        %v743 = vperm.slane %v738, 0
        %v744 = vadd.f32 %v741, %v743
        %v745 = vtanh.pop %v744
        %s746 = sld [smem:[#allocation4 + $0x1e]]
        %v747 = vstv %s746
        %v748 = vmul.f32 %v747, %v745
        %v749 = vadd.f32 %v737, %v748
        %v750 = vld [vmem:[%s317 + $0x1f] sm:$0x1]
        %751 = vset.pattern.permute.xlu0 31
        %752 = vperm.xlu0 %751, %v376
        %v753 = vpop.permute.xlu0 %752
        %v755 = vperm.slane %v750, 0
        %v756 = vadd.f32 %v753, %v755
        %v757 = vtanh.pop %v756
        %s758 = sld [smem:[#allocation4 + $0x1f]]
        %v759 = vstv %s758
        %v760 = vmul.f32 %v759, %v757
        %v761 = vadd.f32 %v749, %v760
        %762 = vst [vmem:[#allocation2] sm:$0xff] %v761
        %v763 = vld [vmem:[#allocation2] sm:$0xff]
        %v764 = vld [vmem:[%s375] sm:$0x1]
        %v766 = vperm.slane %v764, 0
        %v768 = vadd.f32 %v763, %v766
        %769 = vmax.xlane.f32.xlu0 %v768
        %v770 = vpop.xlane.xlu0 %769
        %v771 = vsub.f32 %v768, %v770
        %v772 = vmul.f32 %v771, 1.442695
        %v773 = vpow.pop %v772
        %774 = vadd.xlane.f32.xlu0 %v773
        %v775 = vpop.xlane.xlu0 %774
        %v776 = vrcp.pop %v775
        %v777 = vmul.f32 %v775, %v776
        %v778 = vsub.f32 2.0, %v777
        %v779 = vmul.f32 %v776, %v778
        %v780 = vmul.f32 %v775, %v779
        %v781 = vsub.f32 2.0, %v780
        %v782 = vmul.f32 %v779, %v781
        %v783 = vmul.f32 %v773, %v782
        %784 = vst [vmem:[%s372] sm:$0xff] %v783
        %v785 = vld [vmem:[%s327] sm:$0xff]
        %v786 = vld [vmem:[%s327 + $0x8] sm:$0xff]
        %v787 = vld [vmem:[%s327 + $0x10] sm:$0xff]
        %v788 = vld [vmem:[%s327 + $0x18] sm:$0xff]
        %v789 = vld [vmem:[%s327 + $0x20] sm:$0xff]
        %v790 = vld [vmem:[%s327 + $0x28] sm:$0xff]
        %v791 = vld [vmem:[%s327 + $0x30] sm:$0xff]
        %v792 = vld [vmem:[%s327 + $0x38] sm:$0xff]
        %v793 = vld [vmem:[%s327 + $0x40] sm:$0xff]
        %v794 = vld [vmem:[%s327 + $0x48] sm:$0xff]
        %v795 = vld [vmem:[%s327 + $0x50] sm:$0xff]
        %v796 = vld [vmem:[%s327 + $0x58] sm:$0xff]
        %v797 = vld [vmem:[%s327 + $0x60] sm:$0xff]
        %v798 = vld [vmem:[%s327 + $0x68] sm:$0xff]
        %v799 = vld [vmem:[%s327 + $0x70] sm:$0xff]
        %v800 = vld [vmem:[%s327 + $0x78] sm:$0xff]
        %801 = vmatpush.msra.mxu0 %v800
        %802 = vmatpush.msra.mxu0 %v799
        %803 = vmatpush.msra.mxu0 %v798
        %804 = vmatpush.msra.mxu0 %v797
        %805 = vmatpush.msra.mxu0 %v796
        %806 = vmatpush.msra.mxu0 %v795
        %807 = vmatpush.msra.mxu0 %v794
        %808 = vmatpush.msra.mxu0 %v793
        %809 = vmatpush.msra.mxu0 %v792
        %810 = vmatpush.msra.mxu0 %v791
        %811 = vmatpush.msra.mxu0 %v790
        %812 = vmatpush.msra.mxu0 %v789
        %813 = vmatpush.msra.mxu0 %v788
        %814 = vmatpush.msra.mxu0 %v787
        %815 = vmatpush.msra.mxu0 %v786
        %816 = vmatpush.msra.mxu0 %v785
        %817 = vmatmul.f32.gmra.mxu0 %v783
        %v818 = vpop.f32.mrf.mxu0
        %v819 = vadd.f32 0.0, %v818
        %820 = vdwg.mxu0
        %821 = vst [vmem:[%s365] sm:$0xff] %v819
        %s822 = sand.u32 %s166, 1
        %s823 = scalar_lea.sflag [#allocation7], %s822
        %s824 = sand.u32 %s166, 1
        %s825 = smul.addr %s824, 8
        %s826 = scalar_lea.vmem [#allocation11], %s825
        %s827 = sand.u32 %s194, 1
        %s828 = scalar_lea.sflag [#allocation13], %s827
        %s829 = sand.u32 %s194, 1
        %s830 = smul.addr %s829, 8
        %s831 = scalar_lea.vmem [#allocation12], %s830
        // Predicated region
        $region49: #{tpu_custom_call.1} parent=35 // pred_check
          %p832 = pneg %p176
        $region50: #{tpu_custom_call.1} parent=35 // pred_check_branch
          %834 = sbr.rel (%p832) target = $region52
        $region51: #{tpu_custom_call.1} parent=35 // pred_region
          %836 = vsyncadd %s823, 0
          %s837 = sadd.s32 %s43, %s42
          %s838 = smul.addr %s837, 8
          %s839 = scalar_lea.hbm %s5, %s838
          %s841 = sshll.u32 %s826, 4
          %s842 = int_to_ptr.vmem [resolvable:$true] %s841
          %s843 = sshll.u32 %s839, 4
          %s844 = int_to_ptr.hbm [resolvable:$true] %s843
          %846 = dma.vmem_to_hbm [thread:$0]  %s842, 128, %s844, %s823
        $region52: #{tpu_custom_call.1} parent=35 // pred_fallthru
          _
        // Predicated region
        $region53: #{tpu_custom_call.1} parent=35 // pred_check
          %p847 = pneg %p204
        $region54: #{tpu_custom_call.1} parent=35 // pred_check_branch
          %849 = sbr.rel (%p847) target = $region56
        $region55: #{tpu_custom_call.1} parent=35 // pred_region
          %851 = vsyncadd %s828, 0
          %s852 = sadd.s32 %s43, %s42
          %s853 = smul.addr %s852, 8
          %s854 = scalar_lea.hbm %s6, %s853
          %s856 = sshll.u32 %s831, 4
          %s857 = int_to_ptr.vmem [resolvable:$true] %s856
          %s858 = sshll.u32 %s854, 4
          %s859 = int_to_ptr.hbm [resolvable:$true] %s858
          %861 = dma.vmem_to_hbm [thread:$0]  %s857, 128, %s859, %s828
        $region56: #{tpu_custom_call.1} parent=35 // pred_fallthru
          _
      $region36: #{tpu_custom_call.1} parent=5 // pred_fallthru
        _
      %p862 = scmp.le.s32.totalorder 2, %s33
      // Predicated region
      $region57: #{tpu_custom_call.1} parent=5 // pred_check
        %p863 = pneg %p862
      $region58: #{tpu_custom_call.1} parent=5 // pred_check_branch
        %865 = sbr.rel (%p863) target = $region60
      $region59: #{tpu_custom_call.1} parent=5 // pred_region
        %s866 = ssub.s32 %s33, 2
        // Predicated region
        $region61: #{tpu_custom_call.1} parent=59 // pred_check
          %p867 = pneg %p182
        $region62: #{tpu_custom_call.1} parent=59 // pred_check_branch
          %869 = sbr.rel (%p867) target = $region64
        $region63: #{tpu_custom_call.1} parent=59 // pred_region
          %s870 = sand.u32 %s167, 1
          %s871 = scalar_lea.sflag [#allocation7], %s870
          %s872 = sand.u32 %s167, 1
          %s873 = smul.addr %s872, 8
          %s874 = scalar_lea.vmem [#allocation11], %s873
          %876 = dma.done %s871, 128
        $region64: #{tpu_custom_call.1} parent=59 // pred_fallthru
          _
        // Predicated region
        $region65: #{tpu_custom_call.1} parent=59 // pred_check
          %p877 = pneg %p210
        $region66: #{tpu_custom_call.1} parent=59 // pred_check_branch
          %879 = sbr.rel (%p877) target = $region68
        $region67: #{tpu_custom_call.1} parent=59 // pred_region
          %s880 = sand.u32 %s195, 1
          %s881 = scalar_lea.sflag [#allocation13], %s880
          %s882 = sand.u32 %s195, 1
          %s883 = smul.addr %s882, 8
          %s884 = scalar_lea.vmem [#allocation12], %s883
          %886 = dma.done %s881, 128
        $region68: #{tpu_custom_call.1} parent=59 // pred_fallthru
          _
      $region60: #{tpu_custom_call.1} parent=5 // pred_fallthru
        _
    $region6: #{tpu_custom_call.1} parent=1 // loop_footer
      %s37 = sadd.s32 1, %s33
    $region7: #{tpu_custom_call.1} parent=1 // loop_footer_branch
      %32 = sbr.rel target = $region3
    $region8: #{tpu_custom_call.1} parent=1 // loop_exit
      _
    %887 = vsyncpa [#allocation6], 1
    %s888 = scalar_lea.sflag [#allocation6], 1
    %889 = vsyncpa %s888, 1
    %890 = vsyncpa [#allocation9], 1
    %s891 = scalar_lea.sflag [#allocation9], 1
    %892 = vsyncpa %s891, 1
    %893 = vsyncpa [#allocation7], 1
    %s894 = scalar_lea.sflag [#allocation7], 1
    %895 = vsyncpa %s894, 1
    %896 = vsyncpa [#allocation13], 1
    %s897 = scalar_lea.sflag [#allocation13], 1
    %898 = vsyncpa %s897, 1

</llo_original>
